<compile_context>
chip_gen: v7x
topology: tpu7x:2x2x1
jax: 0.10.0
libtpu: 0.0.40
codegen_flags: <defaults>
</compile_context>

<pallas_src>
import functools

import jax
import jax.numpy as jnp
from jax.experimental import pallas as pl
from jax.experimental.pallas import tpu as pltpu

_BN_EPS = 1e-5


# ---------------------------------------------------------------------------
# Hardware / VMEM budgeting
# ---------------------------------------------------------------------------
def _vmem_capacity_bytes():
    """Physical VMEM per TensorCore (128 MiB v5e/v6e, 64 MiB v7x); safe default."""
    try:
        info = pltpu.get_tpu_info()
        cap = getattr(info, "vmem_capacity_bytes", None)
        if cap:
            return int(cap)
    except Exception:
        pass
    return 64 * 1024 * 1024


def _vmem_budget_and_limit():
    cap = _vmem_capacity_bytes()
    budget = int(cap * 0.7)                       # headroom for Mosaic scratch
    limit = max(32 * 1024 * 1024, min(budget, 112 * 1024 * 1024))
    return budget, limit


def _pick_tile_batch(B, widths, weight_bytes, budget):
    """Largest batch tile s.t. resident weights + double-buffered in/out
    activation tiles fit the per-generation VMEM budget."""
    max_w = max(widths)
    cands = [tb for tb in (4096, 2048, 1024, 512, 256, 128, 64, 32, 16, 8)
             if tb <= B and B % tb == 0]
    for tb in cands:
        act_bytes = 2 * 2 * tb * max_w * 4        # (in + out tile) x double buffer, f32
        if weight_bytes + act_bytes <= budget:
            return tb
    return cands[-1] if cands else B


# ---------------------------------------------------------------------------
# In-kernel helpers
# ---------------------------------------------------------------------------
def _bn_relu_from_tile_stats(z, tile_stats, gamma, beta, n_batch, tile_batch):
    """Exact train-mode BatchNorm + ReLU of the previous layer's activation `z`
    from its per-tile (sum, centered-M2) stats.

    Per-tile stats are combined with Chan's parallel formula (numerically stable,
    unlike sumsq - mean^2) and finalized in-kernel: the rsqrt goes to the EUP
    slot and no BN-finalize HLO glue sits between pallas_calls.
    """
    inv_b = 1.0 / n_batch
    inv_t = 1.0 / tile_batch
    sums = tile_stats[:, 0, :]                    # (T, w) per-tile sums
    m2s = tile_stats[:, 1, :]                     # (T, w) per-tile centered M2
    mean = jnp.sum(sums, axis=0, keepdims=True) * inv_b
    d = sums * inv_t - mean                       # tile means - global mean
    var = (jnp.sum(m2s, axis=0, keepdims=True)
           + float(tile_batch) * jnp.sum(d * d, axis=0, keepdims=True)) * inv_b
    scale = gamma * jax.lax.rsqrt(var + _BN_EPS)
    shift = beta - mean * scale
    return jnp.maximum(z * scale + shift, 0.0)


def _logits(pred, ow, ob, use_vpu_logits):
    if use_vpu_logits:
        # out_dim == 1: an N=1 MXU matmul wastes 127/128 of the tile; do it on the
        # VPU + XLU lane reduce instead.  ow is pre-transposed to (1, pred_w).
        return jnp.sum(pred * ow, axis=-1, keepdims=True) + ob
    return jnp.dot(pred, ow, preferred_element_type=jnp.float32) + ob


# ---------------------------------------------------------------------------
# Kernels
# ---------------------------------------------------------------------------
def _fused_kernel(n_hidden, use_vpu_logits, apply_sigmoid, n_batch, x_ref, *refs):
    """Whole forward in ONE kernel: activations never leave VMEM.
    BN uses the exact two-pass (mean-centered) train-mode formula."""
    inv_b = 1.0 / n_batch
    h = x_ref[...].astype(jnp.float32)
    idx = 0
    for _ in range(n_hidden):
        w_ref, b_ref, g_ref, be_ref = refs[idx:idx + 4]
        idx += 4
        z = jnp.dot(h.astype(w_ref.dtype), w_ref[...],
                    preferred_element_type=jnp.float32) + b_ref[...]
        mean = jnp.sum(z, axis=0, keepdims=True) * inv_b
        zc = z - mean
        var = jnp.sum(zc * zc, axis=0, keepdims=True) * inv_b
        scale = g_ref[...] * jax.lax.rsqrt(var + _BN_EPS)
        h = jnp.maximum(zc * scale + be_ref[...], 0.0)
    wl_ref, bl_ref, ow_ref, ob_ref = refs[idx:idx + 4]
    out_ref, pred_ref = refs[idx + 4:idx + 6]
    pred = jnp.dot(h.astype(wl_ref.dtype), wl_ref[...],
                   preferred_element_type=jnp.float32) + bl_ref[...]
    pred_ref[...] = pred                          # lane-dense (B, n_models * t_last)
    logits = _logits(pred, ow_ref[...], ob_ref[...], use_vpu_logits)
    out_ref[...] = jax.nn.sigmoid(logits) if apply_sigmoid else logits


def _hidden_kernel(first, n_batch, tile_batch, *refs):
    """Batch-tiled fallback: one packed hidden layer per kernel.

    h' = relu(bn(h)) using the PREVIOUS layer's per-tile stats (first layer: h'=h);
    z = h' @ W + b; also emits this layer's per-tile (sum, centered-M2) stats.
    Grid: (batch_tiles,), 'parallel' — per-tile stats mean no cross-tile carry,
    so the batch grid can shard across both v7x TensorCores.
    """
    if first:
        h_ref, w_ref, b_ref, z_ref, st_ref = refs
        h = h_ref[...]
    else:
        h_ref, ps_ref, g_ref, be_ref, w_ref, b_ref, z_ref, st_ref = refs
        h = _bn_relu_from_tile_stats(h_ref[...], ps_ref[...], g_ref[...],
                                     be_ref[...], n_batch, tile_batch)
    z = jnp.dot(h.astype(w_ref.dtype), w_ref[...],
                preferred_element_type=jnp.float32) + b_ref[...]
    z_ref[...] = z
    s = jnp.sum(z, axis=0, keepdims=True)
    zc = z - s * (1.0 / tile_batch)
    st_ref[0:1, :] = s                            # row-sliced stores (no concatenate)
    st_ref[1:2, :] = jnp.sum(zc * zc, axis=0, keepdims=True)


def _final_kernel(apply_bn, use_vpu_logits, apply_sigmoid, n_batch, tile_batch, *refs):
    """Batch-tiled fallback: last BatchDense + addmm + sigmoid."""
    if apply_bn:
        (h_ref, ps_ref, g_ref, be_ref, wl_ref, bl_ref, ow_ref, ob_ref,
         out_ref, pred_ref) = refs
        h = _bn_relu_from_tile_stats(h_ref[...], ps_ref[...], g_ref[...],
                                     be_ref[...], n_batch, tile_batch)
    else:
        h_ref, wl_ref, bl_ref, ow_ref, ob_ref, out_ref, pred_ref = refs
        h = h_ref[...]
    pred = jnp.dot(h.astype(wl_ref.dtype), wl_ref[...],
                   preferred_element_type=jnp.float32) + bl_ref[...]
    pred_ref[...] = pred
    logits = _logits(pred, ow_ref[...], ob_ref[...], use_vpu_logits)
    out_ref[...] = jax.nn.sigmoid(logits) if apply_sigmoid else logits


# ---------------------------------------------------------------------------
# pallas_call wrappers
# ---------------------------------------------------------------------------
def _tile_spec(tb, width):
    return pl.BlockSpec((tb, width), lambda i: (i, 0))


def _resident_spec(shape):
    n = len(shape)
    return pl.BlockSpec(shape, lambda i: (0,) * n)   # VMEM-resident across the grid


def _forward_fused(x, hidden, Wl, bl, ow, ob, *, use_vpu_logits, apply_sigmoid,
                   vmem_limit):
    B = x.shape[0]
    out_dim = int(ob.shape[-1])
    pred_w = int(Wl.shape[1])
    inputs = [x]
    for (W, b, g, be) in hidden:
        inputs += [W, b, g, be]
    inputs += [Wl, bl, ow, ob]
    return pl.pallas_call(
        functools.partial(_fused_kernel, len(hidden), use_vpu_logits,
                          apply_sigmoid, B),
        out_shape=(jax.ShapeDtypeStruct((B, out_dim), jnp.float32),
                   jax.ShapeDtypeStruct((B, pred_w), jnp.float32)),
        compiler_params=pltpu.CompilerParams(vmem_limit_bytes=vmem_limit),
    )(*inputs)


def _hidden_layer_tiled(h, prev_stats, gamma, beta, W, b, *, tile_batch, vmem_limit):
    B, win = h.shape
    wout = int(W.shape[1])
    T = B // tile_batch
    first = prev_stats is None
    inputs, in_specs = [h], [_tile_spec(tile_batch, win)]
    if not first:
        inputs += [prev_stats, gamma, beta]
        in_specs += [_resident_spec(prev_stats.shape), _resident_spec(gamma.shape),
                     _resident_spec(beta.shape)]
    inputs += [W, b]
    in_specs += [_resident_spec(W.shape), _resident_spec(b.shape)]
    return pl.pallas_call(
        functools.partial(_hidden_kernel, first, B, tile_batch),
        grid=(T,),
        in_specs=in_specs,
        out_specs=(_tile_spec(tile_batch, wout),
                   pl.BlockSpec((None, 2, wout), lambda i: (i, 0, 0))),
        out_shape=(jax.ShapeDtypeStruct((B, wout), jnp.float32),
                   jax.ShapeDtypeStruct((T, 2, wout), jnp.float32)),
        compiler_params=pltpu.CompilerParams(
            dimension_semantics=("parallel",),     # per-tile stats -> no carry
            vmem_limit_bytes=vmem_limit),
    )(*inputs)


def _final_layer_tiled(h, prev_stats, gamma, beta, Wl, bl, ow, ob, *, tile_batch,
                       use_vpu_logits, apply_sigmoid, vmem_limit):
    B, win = h.shape
    pred_w = int(Wl.shape[1])
    out_dim = int(ob.shape[-1])
    apply_bn = prev_stats is not None
    inputs, in_specs = [h], [_tile_spec(tile_batch, win)]
    if apply_bn:
        inputs += [prev_stats, gamma, beta]
        in_specs += [_resident_spec(prev_stats.shape), _resident_spec(gamma.shape),
                     _resident_spec(beta.shape)]
    inputs += [Wl, bl, ow, ob]
    in_specs += [_resident_spec(Wl.shape), _resident_spec(bl.shape),
                 _resident_spec(ow.shape), _resident_spec(ob.shape)]
    return pl.pallas_call(
        functools.partial(_final_kernel, apply_bn, use_vpu_logits, apply_sigmoid,
                          B, tile_batch),
        grid=(B // tile_batch,),
        in_specs=in_specs,
        out_specs=(_tile_spec(tile_batch, out_dim), _tile_spec(tile_batch, pred_w)),
        out_shape=(jax.ShapeDtypeStruct((B, out_dim), jnp.float32),
                   jax.ShapeDtypeStruct((B, pred_w), jnp.float32)),
        compiler_params=pltpu.CompilerParams(
            dimension_semantics=("parallel",),
            vmem_limit_bytes=vmem_limit),
    )(*inputs)


def gbdt2nn_forward(x, packed_params, *, apply_sigmoid=True, force_tiled=False,
                    tile_batch=None):
    """Forward pass of GBDT2NN.  Returns (sigmoid(logits), pred) for 'binary'."""
    hidden, Wl, bl, ow, ob, use_vpu_logits = packed_params
    x = x.astype(jnp.float32)                      # x.float()
    B = x.shape[0]
    out_dim = int(ob.shape[-1])
    pred_w = int(Wl.shape[1])

    weight_arrays = [a for layer in hidden for a in layer] + [Wl, bl, ow, ob]
    weight_bytes = sum(int(a.size) * a.dtype.itemsize for a in weight_arrays)
    widths = [int(x.shape[1])] + [int(W.shape[1]) for (W, _, _, _) in hidden] + [pred_w]
    budget, vmem_limit = _vmem_budget_and_limit()

    # Primary path: whole-network fusion — one pallas_call, activations stay in
    # VMEM, BN stats/finalize in-kernel, only out/pred cross HBM.
    fused_bytes = weight_bytes + 4 * B * (widths[0] + pred_w + out_dim + 3 * max(widths))
    if not force_tiled and fused_bytes <= budget:
        return _forward_fused(x, hidden, Wl, bl, ow, ob,
                              use_vpu_logits=use_vpu_logits,
                              apply_sigmoid=apply_sigmoid, vmem_limit=vmem_limit)

    # Fallback: batch-tiled per-layer kernels (per-tile BN stats, 'parallel' grid).
    if tile_batch is None:
        tile_batch = _pick_tile_batch(B, widths, weight_bytes, budget)
    assert B % tile_batch == 0, "batch must be a multiple of the batch tile"
    h, stats, g_prev, be_prev = x, None, None, None
    for (W, b, g, be) in hidden:
        # TODO(synk): optionally store z in bf16 to halve inter-layer HBM traffic.
        h, stats = _hidden_layer_tiled(h, stats, g_prev, be_prev, W, b,
                                       tile_batch=tile_batch, vmem_limit=vmem_limit)
        g_prev, be_prev = g, be
    return _final_layer_tiled(h, stats, g_prev, be_prev, Wl, bl, ow, ob,
                              tile_batch=tile_batch, use_vpu_logits=use_vpu_logits,
                              apply_sigmoid=apply_sigmoid, vmem_limit=vmem_limit)


# ---------------------------------------------------------------------------
# Parameter construction / packing
# ---------------------------------------------------------------------------
def init_params(key, n_feature, tree_layers, out_dim, n_models):
    """Natural (per-model) parameters, mirroring the PyTorch module."""
    dims = [n_feature] + list(tree_layers)
    keys = jax.random.split(key, 4 * len(tree_layers) + 4)
    ki = 0
    hidden = []
    for i in range(len(tree_layers) - 1):
        w = 0.1 * jax.random.normal(keys[ki], (n_models, dims[i], dims[i + 1]), jnp.float32); ki += 1
        b = 0.1 * jax.random.normal(keys[ki], (n_models, 1, dims[i + 1]), jnp.float32); ki += 1
        g = 1.0 + 0.1 * jax.random.normal(keys[ki], (n_models, 1, dims[i + 1]), jnp.float32); ki += 1
        be = 0.1 * jax.random.normal(keys[ki], (n_models, 1, dims[i + 1]), jnp.float32); ki += 1
        hidden.append((w, b, g, be))
    wl = 0.1 * jax.random.normal(keys[ki], (n_models, dims[-2], dims[-1]), jnp.float32); ki += 1
    bl = 0.1 * jax.random.normal(keys[ki], (n_models, 1, dims[-1]), jnp.float32); ki += 1
    ow = 0.1 * jax.random.normal(keys[ki], (n_models, dims[-1], out_dim), jnp.float32); ki += 1
    ob = 0.1 * jax.random.normal(keys[ki], (1, out_dim), jnp.float32)
    return hidden, wl, bl, ow, ob


def pack_params(input_size, used_features, params, *, compute_dtype=jnp.float32):
    """Kernel-ready parameters: index_select folded into the first dense weight,
    per-model BatchDense weights block-diagonalized, biases/BN params flattened
    to (1, n_models*width) in model-major order.  Matmul weights are stored in
    `compute_dtype` (bf16 halves weight DMA/VMEM and feeds the MXU natively).
    TODO(synk): for large n_models, switch to grouped block-diagonal packing with
    a model-group grid axis so weight bytes don't scale as n_models^2.
    """
    hidden, wl, bl, ow, ob = params
    n_models = used_features.shape[0]
    out_dim = int(ow.shape[-1])

    def block_diag(w):                       # (M, fin, fout) -> (M*fin, M*fout)
        M, fin, fout = w.shape
        eye = jnp.eye(M, dtype=w.dtype)
        return (w[:, :, None, :] * eye[:, None, :, None]).reshape(M * fin, M * fout)

    def fold_select(w):                      # (M, n_feature, fout) -> (in, M*fout)
        fout = w.shape[2]

        def one(uf_m, w_m):                  # scatter-add handles duplicate features
            return jnp.zeros((input_size, fout), jnp.float32).at[uf_m].add(w_m)

        w_eff = jax.vmap(one)(used_features, w)          # (M, input_size, fout)
        return jnp.transpose(w_eff, (1, 0, 2)).reshape(input_size, n_models * fout)

    packed_hidden = []
    for li, (w, b, g, be) in enumerate(hidden):
        W = (fold_select(w) if li == 0 else block_diag(w)).astype(compute_dtype)
        packed_hidden.append((W, b.reshape(1, -1), g.reshape(1, -1), be.reshape(1, -1)))

    Wl = (fold_select(wl) if len(hidden) == 0 else block_diag(wl)).astype(compute_dtype)

    use_vpu_logits = (out_dim == 1)
    ow_flat = ow.reshape(-1, out_dim)                    # (M*t_last, out_dim)
    ow_packed = (ow_flat.T if use_vpu_logits else ow_flat).astype(jnp.float32)

    return (packed_hidden, Wl, bl.reshape(1, -1), ow_packed, ob.reshape(1, -1),
            use_vpu_logits)


# ---------------------------------------------------------------------------
# Pure-JAX reference mirroring the PyTorch forward exactly
# ---------------------------------------------------------------------------
def reference_forward(x, used_features, params):
    hidden, wl, bl, ow, ob = params
    n_models, _ = used_features.shape
    B = x.shape[0]
    h = x.astype(jnp.float32)[:, used_features.reshape(-1)]      # index_select
    for (w, b, g, be) in hidden:
        fin, fout = w.shape[1], w.shape[2]
        h3 = h.reshape(B, n_models, fin)
        y = jnp.einsum('bmi,mio->bmo', h3, w) + jnp.transpose(b, (1, 0, 2))
        h = y.reshape(B, n_models * fout)
        gamma = g.reshape(1, -1)
        beta = be.reshape(1, -1)
        mean = jnp.mean(h, axis=0, keepdims=True)
        var = jnp.mean((h - mean) ** 2, axis=0, keepdims=True)   # biased, train-mode
        h = gamma * (h - mean) * jax.lax.rsqrt(var + _BN_EPS) + beta
        h = jnp.maximum(h, 0.0)
    fin, fout = wl.shape[1], wl.shape[2]
    h3 = h.reshape(B, n_models, fin)
    pred = (jnp.einsum('bmi,mio->bmo', h3, wl) + jnp.transpose(bl, (1, 0, 2))
            ).reshape(B, n_models * fout)
    out = jax.nn.sigmoid(pred @ ow.reshape(n_models * fout, -1) + ob)
    return out, pred


if __name__ == "__main__":
    key = jax.random.PRNGKey(0)
    B, input_size = 256, 20
    n_models, n_feature = 8, 16
    tree_layers = (32, 16)
    out_dim = 1

    k_uf, k_x, k_p = jax.random.split(key, 3)
    used_features = jax.random.randint(k_uf, (n_models, n_feature), 0, input_size)
    x = jax.random.normal(k_x, (B, input_size), jnp.float32)

    params = init_params(k_p, n_feature, tree_layers, out_dim, n_models)
    ref_out, ref_pred = reference_forward(x, used_features, params)

    # 1) f32 weights, fully-fused single-kernel path (exact).
    packed_f32 = pack_params(input_size, used_features, params)
    out, pred = jax.jit(lambda v: gbdt2nn_forward(v, packed_f32))(x)
    jax.block_until_ready((out, pred))
    assert out.shape == (B, out_dim)
    assert pred.shape == (B, n_models * tree_layers[-1])
    assert jnp.allclose(out, ref_out, atol=1e-5, rtol=1e-5), "fused out mismatch"
    assert jnp.allclose(pred, ref_pred, atol=1e-5, rtol=1e-5), "fused pred mismatch"

    # 2) f32 weights, batch-tiled fallback (per-tile BN stats, 'parallel' grid).
    out_t, pred_t = jax.jit(
        lambda v: gbdt2nn_forward(v, packed_f32, force_tiled=True, tile_batch=64))(x)
    jax.block_until_ready((out_t, pred_t))
    assert jnp.allclose(out_t, ref_out, atol=1e-5, rtol=1e-5), "tiled out mismatch"
    assert jnp.allclose(pred_t, ref_pred, atol=1e-5, rtol=1e-5), "tiled pred mismatch"

    # 3) bf16 MXU operands (fused path); looser tolerance vs the f32 reference.
    packed_bf16 = pack_params(input_size, used_features, params,
                              compute_dtype=jnp.bfloat16)
    out_b, pred_b = jax.jit(lambda v: gbdt2nn_forward(v, packed_bf16))(x)
    jax.block_until_ready((out_b, pred_b))
    assert bool(jnp.all(jnp.isfinite(out_b))) and bool(jnp.all(jnp.isfinite(pred_b)))
    assert float(jnp.max(jnp.abs(out_b - ref_out))) < 8e-2, "bf16 out mismatch"
    assert float(jnp.max(jnp.abs(pred_b - ref_pred))) < 2e-1, "bf16 pred mismatch"

    print("KERNEL_OK")
</pallas_src>

<mosaic_0001>
module attributes {stable_mosaic.version = 11 : i64} {
  func.func @_fused_kernel(%arg0: memref<256x20xf32, #tpu.memory_space<vmem>>, %arg1: memref<20x256xf32, #tpu.memory_space<vmem>>, %arg2: memref<1x256xf32, #tpu.memory_space<vmem>>, %arg3: memref<1x256xf32, #tpu.memory_space<vmem>>, %arg4: memref<1x256xf32, #tpu.memory_space<vmem>>, %arg5: memref<256x128xf32, #tpu.memory_space<vmem>>, %arg6: memref<1x128xf32, #tpu.memory_space<vmem>>, %arg7: memref<1x128xf32, #tpu.memory_space<vmem>>, %arg8: memref<1x1xf32, #tpu.memory_space<vmem>>, %arg9: memref<256x1xf32, #tpu.memory_space<vmem>>, %arg10: memref<256x128xf32, #tpu.memory_space<vmem>>) attributes {dimension_semantics = [], scalar_prefetch = 0 : i64, scratch_operands = 0 : i64, tpu.core_type = #tpu.core_type<tc>} {
    %c0 = arith.constant 0 : index
    %c0_0 = arith.constant 0 : index
    %0 = vector.load %arg0[%c0, %c0_0] : memref<256x20xf32, #tpu.memory_space<vmem>>, vector<256x20xf32>
    %c0_1 = arith.constant 0 : index
    %c0_2 = arith.constant 0 : index
    %1 = vector.load %arg1[%c0_1, %c0_2] : memref<20x256xf32, #tpu.memory_space<vmem>>, vector<20x256xf32>
    %cst = arith.constant dense<0.000000e+00> : vector<256x256xf32>
    %2 = tpu.matmul %0, %1, %cst {dimension_numbers = #tpu.dot_dimension_numbers<[1], [0], [0], [1], [0, 0, 1, 1], [], []>} : vector<256x20xf32>, vector<20x256xf32>, vector<256x256xf32> -> vector<256x256xf32>
    %c0_3 = arith.constant 0 : index
    %c0_4 = arith.constant 0 : index
    %3 = vector.load %arg2[%c0_3, %c0_4] : memref<1x256xf32, #tpu.memory_space<vmem>>, vector<1x256xf32>
    %4 = vector.broadcast %3 : vector<1x256xf32> to vector<256x256xf32>
    %5 = arith.addf %2, %4 : vector<256x256xf32>
    %cst_5 = arith.constant dense<0.000000e+00> : vector<256xf32>
    %6 = vector.multi_reduction <add>, %5, %cst_5 [0] : vector<256x256xf32> to vector<256xf32>
    %7 = vector.shape_cast %6 : vector<256xf32> to vector<1x256xf32>
    %cst_6 = arith.constant 3.906250e-03 : f32
    %8 = vector.broadcast %cst_6 : f32 to vector<1x256xf32>
    %9 = arith.mulf %7, %8 : vector<1x256xf32>
    %10 = vector.broadcast %9 : vector<1x256xf32> to vector<256x256xf32>
    %11 = arith.subf %5, %10 : vector<256x256xf32>
    %12 = arith.mulf %11, %11 : vector<256x256xf32>
    %cst_7 = arith.constant dense<0.000000e+00> : vector<256xf32>
    %13 = vector.multi_reduction <add>, %12, %cst_7 [0] : vector<256x256xf32> to vector<256xf32>
    %14 = vector.shape_cast %13 : vector<256xf32> to vector<1x256xf32>
    %cst_8 = arith.constant 3.906250e-03 : f32
    %15 = vector.broadcast %cst_8 : f32 to vector<1x256xf32>
    %16 = arith.mulf %14, %15 : vector<1x256xf32>
    %c0_9 = arith.constant 0 : index
    %c0_10 = arith.constant 0 : index
    %17 = vector.load %arg3[%c0_9, %c0_10] : memref<1x256xf32, #tpu.memory_space<vmem>>, vector<1x256xf32>
    %cst_11 = arith.constant 9.99999974E-6 : f32
    %18 = vector.broadcast %cst_11 : f32 to vector<1x256xf32>
    %19 = arith.addf %16, %18 : vector<1x256xf32>
    %20 = math.rsqrt %19 : vector<1x256xf32>
    %21 = arith.mulf %17, %20 : vector<1x256xf32>
    %22 = vector.broadcast %21 : vector<1x256xf32> to vector<256x256xf32>
    %23 = arith.mulf %11, %22 : vector<256x256xf32>
    %c0_12 = arith.constant 0 : index
    %c0_13 = arith.constant 0 : index
    %24 = vector.load %arg4[%c0_12, %c0_13] : memref<1x256xf32, #tpu.memory_space<vmem>>, vector<1x256xf32>
    %25 = vector.broadcast %24 : vector<1x256xf32> to vector<256x256xf32>
    %26 = arith.addf %23, %25 : vector<256x256xf32>
    %cst_14 = arith.constant 0.000000e+00 : f32
    %27 = vector.broadcast %cst_14 : f32 to vector<256x256xf32>
    %28 = arith.maximumf %26, %27 : vector<256x256xf32>
    %c0_15 = arith.constant 0 : index
    %c0_16 = arith.constant 0 : index
    %29 = vector.load %arg5[%c0_15, %c0_16] : memref<256x128xf32, #tpu.memory_space<vmem>>, vector<256x128xf32>
    %cst_17 = arith.constant dense<0.000000e+00> : vector<256x128xf32>
    %30 = tpu.matmul %28, %29, %cst_17 {dimension_numbers = #tpu.dot_dimension_numbers<[1], [0], [0], [1], [0, 0, 1, 1], [], []>} : vector<256x256xf32>, vector<256x128xf32>, vector<256x128xf32> -> vector<256x128xf32>
    %c0_18 = arith.constant 0 : index
    %c0_19 = arith.constant 0 : index
    %31 = vector.load %arg6[%c0_18, %c0_19] : memref<1x128xf32, #tpu.memory_space<vmem>>, vector<1x128xf32>
    %32 = vector.broadcast %31 : vector<1x128xf32> to vector<256x128xf32>
    %33 = arith.addf %30, %32 : vector<256x128xf32>
    %c0_20 = arith.constant 0 : index
    %c0_21 = arith.constant 0 : index
    %34 = vector.load %arg10[%c0_20, %c0_21] : memref<256x128xf32, #tpu.memory_space<vmem>>, vector<256x128xf32>
    tpu.vector_store %arg10[%c0_20, %c0_21], %33 {strides = array<i32>} : memref<256x128xf32, #tpu.memory_space<vmem>>, vector<256x128xf32>,
    %c0_22 = arith.constant 0 : index
    %c0_23 = arith.constant 0 : index
    %35 = vector.load %arg7[%c0_22, %c0_23] : memref<1x128xf32, #tpu.memory_space<vmem>>, vector<1x128xf32>
    %c0_24 = arith.constant 0 : index
    %c0_25 = arith.constant 0 : index
    %36 = vector.load %arg8[%c0_24, %c0_25] : memref<1x1xf32, #tpu.memory_space<vmem>>, vector<1x1xf32>
    %37 = vector.broadcast %35 : vector<1x128xf32> to vector<256x128xf32>
    %38 = arith.mulf %33, %37 : vector<256x128xf32>
    %cst_26 = arith.constant dense<0.000000e+00> : vector<256xf32>
    %39 = vector.multi_reduction <add>, %38, %cst_26 [1] : vector<256x128xf32> to vector<256xf32>
    %40 = vector.shape_cast %39 : vector<256xf32> to vector<256x1xf32>
    %41 = vector.broadcast %36 : vector<1x1xf32> to vector<256x1xf32>
    %42 = arith.addf %40, %41 : vector<256x1xf32>
    %43 = arith.negf %42 : vector<256x1xf32>
    %44 = math.exp %43 : vector<256x1xf32>
    %cst_27 = arith.constant 1.000000e+00 : f32
    %45 = vector.broadcast %cst_27 : f32 to vector<256x1xf32>
    %46 = arith.addf %45, %44 : vector<256x1xf32>
    %47 = arith.divf %45, %46 : vector<256x1xf32>
    %c0_28 = arith.constant 0 : index
    %c0_29 = arith.constant 0 : index
    %48 = vector.load %arg9[%c0_28, %c0_29] : memref<256x1xf32, #tpu.memory_space<vmem>>, vector<256x1xf32>
    tpu.vector_store %arg9[%c0_28, %c0_29], %47 {strides = array<i32>} : memref<256x1xf32, #tpu.memory_space<vmem>>, vector<256x1xf32>,
    return
  }
}

</mosaic_0001>

<llo_original>
// kernel: _lambda_.1
$region0: #{_lambda_.1}
  #allocation0 [shape = 'u32[]', space=smem, size = 0x4, offset = 0x4, fixed_abs, tag = 'smem constant byte address 0x4 - core index']
  #allocation1 [shape = 'u32[144,128]{1,0:T(1,128)}', space=vmem, size = 0x12000, scoped, tag = 'internal scratch']
  #allocation2 [shape = 'f32[1,1]{1,0:T(1,128)S(1)}', space=vmem, size = 0x200, scoped, tag = 'scoped memory for _lambda_.1']
  %s0 = inlined_call_operand.vmem [shape: f32[256,20], index: 0, kind: input, shape index: {}]
  %s1 = inlined_call_operand.vmem [shape: f32[20,256], index: 1, kind: input, shape index: {}]
  %s2 = inlined_call_operand.vmem [shape: f32[1,256], index: 2, kind: input, shape index: {}]
  %s3 = inlined_call_operand.vmem [shape: f32[1,256], index: 3, kind: input, shape index: {}]
  %s4 = inlined_call_operand.vmem [shape: f32[1,256], index: 4, kind: input, shape index: {}]
  %s5 = inlined_call_operand.vmem [shape: f32[256,128], index: 5, kind: input, shape index: {}]
  %s6 = inlined_call_operand.vmem [shape: f32[1,128], index: 6, kind: input, shape index: {}]
  %s7 = inlined_call_operand.vmem [shape: f32[1,128], index: 7, kind: input, shape index: {}]
  %s8 = inlined_call_operand.<no memory space> [shape: f32[1,1], index: 8, kind: input, shape index: {}]
  %s9 = inlined_call_operand.vmem [shape: f32[256,1], index: 9, kind: output, shape index: {0}]
  %s10 = inlined_call_operand.hbm [shape: f32[256,128], index: 10, kind: output, shape index: {1}]
  %11 = xla_tuple %s9, %s10
  %s12 = sld [smem:[#allocation0]]
  $region54: #{_lambda_.1} parent=0
    _
  %s14 = ssub.s32 1, %s12
  %s15 = scalar_select 0, %s14, %s12
  %v16 = vstv %s8
  %17 = vst [vmem:[#allocation2] sm:$0x1] %v16
  $region1: #{_lambda_.1} parent=0
    #allocation3 [shape = 'u8[131072]{0}', space=vmem, size = 0x20000, scoped, tag = 'output window, operand 1, single buffered']
    #allocation4 [shape = 's32[1]{0}', space=sflag, size = 0x4, scoped, tag = 'scoped memory for _lambda_.1']
    %18 = vsyncpa [#allocation4], 0
    // Predicated region
    $region2: #{_lambda_.1} parent=1 // pred_check
      _
    $region3: #{_lambda_.1} parent=1 // pred_check_branch
      %20 = sbr.rel (0) target = $region5
    $region4: #{_lambda_.1} parent=1 // pred_region
      _
    $region5: #{_lambda_.1} parent=1 // pred_fallthru
      _
    // Predicated region
    $region6: #{_lambda_.1} parent=1 // pred_check
      _
    $region7: #{_lambda_.1} parent=1 // pred_check_branch
      %22 = sbr.rel (0) target = $region9
    $region8: #{_lambda_.1} parent=1 // pred_region
      _
    $region9: #{_lambda_.1} parent=1 // pred_fallthru
      _
    // Predicated region
    $region10: #{_lambda_.1} parent=1 // pred_check
      _
    $region11: #{_lambda_.1} parent=1 // pred_check_branch
      %24 = sbr.rel (0) target = $region13
    $region12: #{_lambda_.1} parent=1 // pred_region
      _
    $region13: #{_lambda_.1} parent=1 // pred_fallthru
      _
    // Predicated region
    $region14: #{_lambda_.1} parent=1 // pred_check
      _
    $region15: #{_lambda_.1} parent=1 // pred_check_branch
      %26 = sbr.rel (0) target = $region17
    $region16: #{_lambda_.1} parent=1 // pred_region
      _
    $region17: #{_lambda_.1} parent=1 // pred_fallthru
      _
    // Predicated region
    $region18: #{_lambda_.1} parent=1 // pred_check
      _
    $region19: #{_lambda_.1} parent=1 // pred_check_branch
      %28 = sbr.rel (0) target = $region21
    $region20: #{_lambda_.1} parent=1 // pred_region
      _
    $region21: #{_lambda_.1} parent=1 // pred_fallthru
      _
    // Predicated region
    $region22: #{_lambda_.1} parent=1 // pred_check
      _
    $region23: #{_lambda_.1} parent=1 // pred_check_branch
      %30 = sbr.rel (0) target = $region25
    $region24: #{_lambda_.1} parent=1 // pred_region
      _
    $region25: #{_lambda_.1} parent=1 // pred_fallthru
      _
    // Predicated region
    $region26: #{_lambda_.1} parent=1 // pred_check
      _
    $region27: #{_lambda_.1} parent=1 // pred_check_branch
      %32 = sbr.rel (0) target = $region29
    $region28: #{_lambda_.1} parent=1 // pred_region
      _
    $region29: #{_lambda_.1} parent=1 // pred_fallthru
      _
    // Predicated region
    $region30: #{_lambda_.1} parent=1 // pred_check
      _
    $region31: #{_lambda_.1} parent=1 // pred_check_branch
      %34 = sbr.rel (0) target = $region33
    $region32: #{_lambda_.1} parent=1 // pred_region
      _
    $region33: #{_lambda_.1} parent=1 // pred_fallthru
      _
    // Predicated region
    $region34: #{_lambda_.1} parent=1 // pred_check
      _
    $region35: #{_lambda_.1} parent=1 // pred_check_branch
      %36 = sbr.rel (0) target = $region37
    $region36: #{_lambda_.1} parent=1 // pred_region
      _
    $region37: #{_lambda_.1} parent=1 // pred_fallthru
      _
    %v37 = vld [vmem:[%s0] sm:$0xff]
    %v38 = vld [vmem:[%s0 + $0x8] sm:$0xff]
    %v39 = vld [vmem:[%s0 + $0x10] sm:$0xff]
    %v40 = vld [vmem:[%s0 + $0x18] sm:$0xff]
    %v41 = vld [vmem:[%s0 + $0x20] sm:$0xff]
    %v42 = vld [vmem:[%s0 + $0x28] sm:$0xff]
    %v43 = vld [vmem:[%s0 + $0x30] sm:$0xff]
    %v44 = vld [vmem:[%s0 + $0x38] sm:$0xff]
    %v45 = vld [vmem:[%s0 + $0x40] sm:$0xff]
    %v46 = vld [vmem:[%s0 + $0x48] sm:$0xff]
    %v47 = vld [vmem:[%s0 + $0x50] sm:$0xff]
    %v48 = vld [vmem:[%s0 + $0x58] sm:$0xff]
    %v49 = vld [vmem:[%s0 + $0x60] sm:$0xff]
    %v50 = vld [vmem:[%s0 + $0x68] sm:$0xff]
    %v51 = vld [vmem:[%s0 + $0x70] sm:$0xff]
    %v52 = vld [vmem:[%s0 + $0x78] sm:$0xff]
    %v53 = vld [vmem:[%s0 + $0x80] sm:$0xff]
    %v54 = vld [vmem:[%s0 + $0x88] sm:$0xff]
    %v55 = vld [vmem:[%s0 + $0x90] sm:$0xff]
    %v56 = vld [vmem:[%s0 + $0x98] sm:$0xff]
    %v57 = vld [vmem:[%s0 + $0xa0] sm:$0xff]
    %v58 = vld [vmem:[%s0 + $0xa8] sm:$0xff]
    %v59 = vld [vmem:[%s0 + $0xb0] sm:$0xff]
    %v60 = vld [vmem:[%s0 + $0xb8] sm:$0xff]
    %v61 = vld [vmem:[%s0 + $0xc0] sm:$0xff]
    %v62 = vld [vmem:[%s0 + $0xc8] sm:$0xff]
    %v63 = vld [vmem:[%s0 + $0xd0] sm:$0xff]
    %v64 = vld [vmem:[%s0 + $0xd8] sm:$0xff]
    %v65 = vld [vmem:[%s0 + $0xe0] sm:$0xff]
    %v66 = vld [vmem:[%s0 + $0xe8] sm:$0xff]
    %v67 = vld [vmem:[%s0 + $0xf0] sm:$0xff]
    %v68 = vld [vmem:[%s0 + $0xf8] sm:$0xff]
    %v69 = vld [vmem:[%s1] sm:$0xff]
    %v70 = vld [vmem:[%s1 + $0x8] sm:$0xff]
    %v71 = vld [vmem:[%s1 + $0x10] sm:$0xff]
    %v72 = vld [vmem:[%s1 + $0x18] sm:$0xff]
    %v73 = vld [vmem:[%s1 + $0x20] sm:$0xf]
    %v74 = vld [vmem:[%s1 + $0x28] sm:$0xf]
    %v75 = vld [vmem:[%s2] sm:$0x3]
    %v77 = vlaneseq
    %v78 = vshrl.u32 %v77, 7
    %v79 = vsub.s32 0, %v78
    %v80 = vrot.slane %v75, %v79
    %v81 = vlaneseq
    %v82 = vshrl.u32 %v81, 7
    %v83 = vsub.s32 1, %v82
    %v84 = vrot.slane %v75, %v83
    %vm87 = vcmask 162816
    %v89 = vsel %vm87, %v37, 0
    %v92 = vsel %vm87, %v38, 0
    %v95 = vsel %vm87, %v39, 0
    %v98 = vsel %vm87, %v40, 0
    %v101 = vsel %vm87, %v41, 0
    %v104 = vsel %vm87, %v42, 0
    %v107 = vsel %vm87, %v43, 0
    %v110 = vsel %vm87, %v44, 0
    %v113 = vsel %vm87, %v45, 0
    %v116 = vsel %vm87, %v46, 0
    %v119 = vsel %vm87, %v47, 0
    %v122 = vsel %vm87, %v48, 0
    %v125 = vsel %vm87, %v49, 0
    %v128 = vsel %vm87, %v50, 0
    %v131 = vsel %vm87, %v51, 0
    %v134 = vsel %vm87, %v52, 0
    %v137 = vsel %vm87, %v53, 0
    %v140 = vsel %vm87, %v54, 0
    %v143 = vsel %vm87, %v55, 0
    %v146 = vsel %vm87, %v56, 0
    %v149 = vsel %vm87, %v57, 0
    %v152 = vsel %vm87, %v58, 0
    %v155 = vsel %vm87, %v59, 0
    %v158 = vsel %vm87, %v60, 0
    %v161 = vsel %vm87, %v61, 0
    %v164 = vsel %vm87, %v62, 0
    %v167 = vsel %vm87, %v63, 0
    %v170 = vsel %vm87, %v64, 0
    %v173 = vsel %vm87, %v65, 0
    %v176 = vsel %vm87, %v66, 0
    %v179 = vsel %vm87, %v67, 0
    %v182 = vsel %vm87, %v68, 0
    %vm184 = vcmask 1043456
    %v186 = vsel %vm184, %v73, 0
    %v189 = vsel %vm184, %v74, 0
    %191 = vmatprep.subr.mxu0 %v70
    %192 = vmatpush1.msra.mxu0 %v69
    %193 = vmatprep.subr.mxu0 %v72
    %194 = vmatpush1.msra.mxu0 %v71
    %195 = vmatprep.subr.mxu0 %v189
    %196 = vmatpush1.msra.mxu0 %v186
    %197 = vmatprep.subr.mxu0 0.0
    %198 = vmatpush1.msra.mxu0 0.0
    %199 = vmatprep.subr.mxu0 0.0
    %200 = vmatpush1.msra.mxu0 0.0
    %201 = vmatprep.subr.mxu0 0.0
    %202 = vmatpush1.msra.mxu0 0.0
    %203 = vmatprep.subr.mxu0 0.0
    %204 = vmatpush1.msra.mxu0 0.0
    %205 = vmatprep.subr.mxu0 0.0
    %206 = vmatpush1.msra.mxu0 0.0
    %207 = vmatprep.subr.mxu0 0.0
    %208 = vmatpush1.msra.mxu0 0.0
    %209 = vmatprep.subr.mxu0 0.0
    %210 = vmatpush1.msra.mxu0 0.0
    %211 = vmatprep.subr.mxu0 0.0
    %212 = vmatpush1.msra.mxu0 0.0
    %213 = vmatprep.subr.mxu0 0.0
    %214 = vmatpush1.msra.mxu0 0.0
    %215 = vmatprep.subr.mxu0 0.0
    %216 = vmatpush1.msra.mxu0 0.0
    %217 = vmatprep.subr.mxu0 0.0
    %218 = vmatpush1.msra.mxu0 0.0
    %219 = vmatprep.subr.mxu0 0.0
    %220 = vmatpush1.msra.mxu0 0.0
    %221 = vmatprep.subr.mxu0 0.0
    %222 = vmatpush1.msra.mxu0 0.0
    %223 = vmatprep.subr.mxu0 0.0
    %224 = vmatpush1.msra.mxu0 0.0
    %225 = vmatprep.subr.mxu0 0.0
    %226 = vmatpush1.msra.mxu0 0.0
    %227 = vmatprep.subr.mxu0 0.0
    %228 = vmatpush1.msra.mxu0 0.0
    %229 = vmatprep.subr.mxu0 0.0
    %230 = vmatpush1.msra.mxu0 0.0
    %231 = vmatprep.subr.mxu0 0.0
    %232 = vmatpush1.msra.mxu0 0.0
    %233 = vmatprep.subr.mxu0 0.0
    %234 = vmatpush1.msra.mxu0 0.0
    %235 = vmatprep.subr.mxu0 0.0
    %236 = vmatpush1.msra.mxu0 0.0
    %237 = vmatprep.subr.mxu0 0.0
    %238 = vmatpush1.msra.mxu0 0.0
    %239 = vmatprep.subr.mxu0 0.0
    %240 = vmatpush1.msra.mxu0 0.0
    %241 = vmatprep.subr.mxu0 0.0
    %242 = vmatpush1.msra.mxu0 0.0
    %243 = vmatprep.subr.mxu0 0.0
    %244 = vmatpush1.msra.mxu0 0.0
    %245 = vmatprep.subr.mxu0 0.0
    %246 = vmatpush1.msra.mxu0 0.0
    %247 = vmatprep.subr.mxu0 0.0
    %248 = vmatpush1.msra.mxu0 0.0
    %249 = vmatprep.subr.mxu0 0.0
    %250 = vmatpush1.msra.mxu0 0.0
    %251 = vmatprep.subr.mxu0 0.0
    %252 = vmatpush1.msra.mxu0 0.0
    %253 = vmatprep.subr.mxu0 0.0
    %254 = vmatpush1.msra.mxu0 0.0
    %255 = vmatprep.mubr.f32.mxu0 0.0
    %256 = vmatmul.mubr.f32.gmra.mrb[0].mxu0 %v89
    %v257 = vpop.f32.mrb[0].mxu0
    %v258 = vadd.f32 %v80, %v257
    %v259 = vpop.f32.mrb[0].mxu0
    %v260 = vadd.f32 %v84, %v259
    %261 = vmatprep.mubr.f32.mxu0 0.0
    %262 = vmatmul.mubr.f32.gmra.mrb[0].mxu0 %v92
    %v263 = vpop.f32.mrb[0].mxu0
    %v264 = vadd.f32 %v80, %v263
    %v265 = vpop.f32.mrb[0].mxu0
    %v266 = vadd.f32 %v84, %v265
    %267 = vmatprep.mubr.f32.mxu0 0.0
    %268 = vmatmul.mubr.f32.gmra.mrb[0].mxu0 %v95
    %v269 = vpop.f32.mrb[0].mxu0
    %v270 = vadd.f32 %v80, %v269
    %v271 = vpop.f32.mrb[0].mxu0
    %v272 = vadd.f32 %v84, %v271
    %273 = vmatprep.mubr.f32.mxu0 0.0
    %274 = vmatmul.mubr.f32.gmra.mrb[0].mxu0 %v98
    %v275 = vpop.f32.mrb[0].mxu0
    %v276 = vadd.f32 %v80, %v275
    %v277 = vpop.f32.mrb[0].mxu0
    %v278 = vadd.f32 %v84, %v277
    %279 = vmatprep.mubr.f32.mxu0 0.0
    %280 = vmatmul.mubr.f32.gmra.mrb[0].mxu0 %v101
    %v281 = vpop.f32.mrb[0].mxu0
    %v282 = vadd.f32 %v80, %v281
    %v283 = vpop.f32.mrb[0].mxu0
    %v284 = vadd.f32 %v84, %v283
    %285 = vmatprep.mubr.f32.mxu0 0.0
    %286 = vmatmul.mubr.f32.gmra.mrb[0].mxu0 %v104
    %v287 = vpop.f32.mrb[0].mxu0
    %v288 = vadd.f32 %v80, %v287
    %v289 = vpop.f32.mrb[0].mxu0
    %v290 = vadd.f32 %v84, %v289
    %291 = vmatprep.mubr.f32.mxu0 0.0
    %292 = vmatmul.mubr.f32.gmra.mrb[0].mxu0 %v107
    %v293 = vpop.f32.mrb[0].mxu0
    %v294 = vadd.f32 %v80, %v293
    %v295 = vpop.f32.mrb[0].mxu0
    %v296 = vadd.f32 %v84, %v295
    %297 = vmatprep.mubr.f32.mxu0 0.0
    %298 = vmatmul.mubr.f32.gmra.mrb[0].mxu0 %v110
    %v299 = vpop.f32.mrb[0].mxu0
    %v300 = vadd.f32 %v80, %v299
    %v301 = vpop.f32.mrb[0].mxu0
    %v302 = vadd.f32 %v84, %v301
    %303 = vmatprep.mubr.f32.mxu0 0.0
    %304 = vmatmul.mubr.f32.gmra.mrb[0].mxu0 %v113
    %v305 = vpop.f32.mrb[0].mxu0
    %v306 = vadd.f32 %v80, %v305
    %v307 = vpop.f32.mrb[0].mxu0
    %v308 = vadd.f32 %v84, %v307
    %309 = vmatprep.mubr.f32.mxu0 0.0
    %310 = vmatmul.mubr.f32.gmra.mrb[0].mxu0 %v116
    %v311 = vpop.f32.mrb[0].mxu0
    %v312 = vadd.f32 %v80, %v311
    %v313 = vpop.f32.mrb[0].mxu0
    %v314 = vadd.f32 %v84, %v313
    %315 = vmatprep.mubr.f32.mxu0 0.0
    %316 = vmatmul.mubr.f32.gmra.mrb[0].mxu0 %v119
    %v317 = vpop.f32.mrb[0].mxu0
    %v318 = vadd.f32 %v80, %v317
    %v319 = vpop.f32.mrb[0].mxu0
    %v320 = vadd.f32 %v84, %v319
    %321 = vmatprep.mubr.f32.mxu0 0.0
    %322 = vmatmul.mubr.f32.gmra.mrb[0].mxu0 %v122
    %v323 = vpop.f32.mrb[0].mxu0
    %v324 = vadd.f32 %v80, %v323
    %v325 = vpop.f32.mrb[0].mxu0
    %v326 = vadd.f32 %v84, %v325
    %327 = vmatprep.mubr.f32.mxu0 0.0
    %328 = vmatmul.mubr.f32.gmra.mrb[0].mxu0 %v125
    %v329 = vpop.f32.mrb[0].mxu0
    %v330 = vadd.f32 %v80, %v329
    %v331 = vpop.f32.mrb[0].mxu0
    %v332 = vadd.f32 %v84, %v331
    %333 = vmatprep.mubr.f32.mxu0 0.0
    %334 = vmatmul.mubr.f32.gmra.mrb[0].mxu0 %v128
    %v335 = vpop.f32.mrb[0].mxu0
    %v336 = vadd.f32 %v80, %v335
    %v337 = vpop.f32.mrb[0].mxu0
    %v338 = vadd.f32 %v84, %v337
    %339 = vmatprep.mubr.f32.mxu0 0.0
    %340 = vmatmul.mubr.f32.gmra.mrb[0].mxu0 %v131
    %v341 = vpop.f32.mrb[0].mxu0
    %v342 = vadd.f32 %v80, %v341
    %v343 = vpop.f32.mrb[0].mxu0
    %v344 = vadd.f32 %v84, %v343
    %345 = vmatprep.mubr.f32.mxu0 0.0
    %346 = vmatmul.mubr.f32.gmra.mrb[0].mxu0 %v134
    %v347 = vpop.f32.mrb[0].mxu0
    %v348 = vadd.f32 %v80, %v347
    %v349 = vpop.f32.mrb[0].mxu0
    %v350 = vadd.f32 %v84, %v349
    %351 = vmatprep.mubr.f32.mxu0 0.0
    %352 = vmatmul.mubr.f32.gmra.mrb[0].mxu0 %v137
    %v353 = vpop.f32.mrb[0].mxu0
    %v354 = vadd.f32 %v80, %v353
    %v355 = vpop.f32.mrb[0].mxu0
    %v356 = vadd.f32 %v84, %v355
    %357 = vmatprep.mubr.f32.mxu0 0.0
    %358 = vmatmul.mubr.f32.gmra.mrb[0].mxu0 %v140
    %v359 = vpop.f32.mrb[0].mxu0
    %v360 = vadd.f32 %v80, %v359
    %v361 = vpop.f32.mrb[0].mxu0
    %v362 = vadd.f32 %v84, %v361
    %363 = vmatprep.mubr.f32.mxu0 0.0
    %364 = vmatmul.mubr.f32.gmra.mrb[0].mxu0 %v143
    %v365 = vpop.f32.mrb[0].mxu0
    %v366 = vadd.f32 %v80, %v365
    %v367 = vpop.f32.mrb[0].mxu0
    %v368 = vadd.f32 %v84, %v367
    %369 = vmatprep.mubr.f32.mxu0 0.0
    %370 = vmatmul.mubr.f32.gmra.mrb[0].mxu0 %v146
    %v371 = vpop.f32.mrb[0].mxu0
    %v372 = vadd.f32 %v80, %v371
    %v373 = vpop.f32.mrb[0].mxu0
    %v374 = vadd.f32 %v84, %v373
    %375 = vmatprep.mubr.f32.mxu0 0.0
    %376 = vmatmul.mubr.f32.gmra.mrb[0].mxu0 %v149
    %v377 = vpop.f32.mrb[0].mxu0
    %v378 = vadd.f32 %v80, %v377
    %v379 = vpop.f32.mrb[0].mxu0
    %v380 = vadd.f32 %v84, %v379
    %381 = vmatprep.mubr.f32.mxu0 0.0
    %382 = vmatmul.mubr.f32.gmra.mrb[0].mxu0 %v152
    %v383 = vpop.f32.mrb[0].mxu0
    %v384 = vadd.f32 %v80, %v383
    %v385 = vpop.f32.mrb[0].mxu0
    %v386 = vadd.f32 %v84, %v385
    %387 = vmatprep.mubr.f32.mxu0 0.0
    %388 = vmatmul.mubr.f32.gmra.mrb[0].mxu0 %v155
    %v389 = vpop.f32.mrb[0].mxu0
    %v390 = vadd.f32 %v80, %v389
    %v391 = vpop.f32.mrb[0].mxu0
    %v392 = vadd.f32 %v84, %v391
    %393 = vmatprep.mubr.f32.mxu0 0.0
    %394 = vmatmul.mubr.f32.gmra.mrb[0].mxu0 %v158
    %v395 = vpop.f32.mrb[0].mxu0
    %v396 = vadd.f32 %v80, %v395
    %v397 = vpop.f32.mrb[0].mxu0
    %v398 = vadd.f32 %v84, %v397
    %399 = vmatprep.mubr.f32.mxu0 0.0
    %400 = vmatmul.mubr.f32.gmra.mrb[0].mxu0 %v161
    %v401 = vpop.f32.mrb[0].mxu0
    %v402 = vadd.f32 %v80, %v401
    %v403 = vpop.f32.mrb[0].mxu0
    %v404 = vadd.f32 %v84, %v403
    %405 = vmatprep.mubr.f32.mxu0 0.0
    %406 = vmatmul.mubr.f32.gmra.mrb[0].mxu0 %v164
    %v407 = vpop.f32.mrb[0].mxu0
    %v408 = vadd.f32 %v80, %v407
    %v409 = vpop.f32.mrb[0].mxu0
    %v410 = vadd.f32 %v84, %v409
    %411 = vmatprep.mubr.f32.mxu0 0.0
    %412 = vmatmul.mubr.f32.gmra.mrb[0].mxu0 %v167
    %v413 = vpop.f32.mrb[0].mxu0
    %v414 = vadd.f32 %v80, %v413
    %v415 = vpop.f32.mrb[0].mxu0
    %v416 = vadd.f32 %v84, %v415
    %417 = vmatprep.mubr.f32.mxu0 0.0
    %418 = vmatmul.mubr.f32.gmra.mrb[0].mxu0 %v170
    %v419 = vpop.f32.mrb[0].mxu0
    %v420 = vadd.f32 %v80, %v419
    %v421 = vpop.f32.mrb[0].mxu0
    %v422 = vadd.f32 %v84, %v421
    %423 = vmatprep.mubr.f32.mxu0 0.0
    %424 = vmatmul.mubr.f32.gmra.mrb[0].mxu0 %v173
    %v425 = vpop.f32.mrb[0].mxu0
    %v426 = vadd.f32 %v80, %v425
    %v427 = vpop.f32.mrb[0].mxu0
    %v428 = vadd.f32 %v84, %v427
    %429 = vmatprep.mubr.f32.mxu0 0.0
    %430 = vmatmul.mubr.f32.gmra.mrb[0].mxu0 %v176
    %v431 = vpop.f32.mrb[0].mxu0
    %v432 = vadd.f32 %v80, %v431
    %v433 = vpop.f32.mrb[0].mxu0
    %v434 = vadd.f32 %v84, %v433
    %435 = vmatprep.mubr.f32.mxu0 0.0
    %436 = vmatmul.mubr.f32.gmra.mrb[0].mxu0 %v179
    %v437 = vpop.f32.mrb[0].mxu0
    %v438 = vadd.f32 %v80, %v437
    %v439 = vpop.f32.mrb[0].mxu0
    %v440 = vadd.f32 %v84, %v439
    %441 = vmatprep.mubr.f32.mxu0 0.0
    %442 = vmatmul.mubr.f32.gmra.mrb[0].mxu0 %v182
    %v443 = vpop.f32.mrb[0].mxu0
    %v444 = vadd.f32 %v80, %v443
    %v445 = vpop.f32.mrb[0].mxu0
    %v446 = vadd.f32 %v84, %v445
    %447 = vdwg.mxu0
    %v448 = vadd.f32 %v258, %v264
    %v449 = vadd.f32 %v448, %v270
    %v450 = vadd.f32 %v449, %v276
    %v451 = vadd.f32 %v450, %v282
    %v452 = vadd.f32 %v451, %v288
    %v453 = vadd.f32 %v452, %v294
    %v454 = vadd.f32 %v453, %v300
    %v455 = vadd.f32 %v454, %v306
    %v456 = vadd.f32 %v455, %v312
    %v457 = vadd.f32 %v456, %v318
    %v458 = vadd.f32 %v457, %v324
    %v459 = vadd.f32 %v458, %v330
    %v460 = vadd.f32 %v459, %v336
    %v461 = vadd.f32 %v460, %v342
    %v462 = vadd.f32 %v461, %v348
    %v463 = vadd.f32 %v462, %v354
    %v464 = vadd.f32 %v463, %v360
    %v465 = vadd.f32 %v464, %v366
    %v466 = vadd.f32 %v465, %v372
    %v467 = vadd.f32 %v466, %v378
    %v468 = vadd.f32 %v467, %v384
    %v469 = vadd.f32 %v468, %v390
    %v470 = vadd.f32 %v469, %v396
    %v471 = vadd.f32 %v470, %v402
    %v472 = vadd.f32 %v471, %v408
    %v473 = vadd.f32 %v472, %v414
    %v474 = vadd.f32 %v473, %v420
    %v475 = vadd.f32 %v474, %v426
    %v476 = vadd.f32 %v475, %v432
    %v477 = vadd.f32 %v476, %v438
    %v478 = vadd.f32 %v477, %v444
    %v479 = vrot.slane %v478, 4
    %v480 = vadd.f32 %v478, %v479
    %v481 = vrot.slane %v480, 2
    %v482 = vadd.f32 %v480, %v481
    %v483 = vrot.slane %v482, 1
    %v484 = vadd.f32 %v482, %v483
    %v485 = vadd.f32 %v260, %v266
    %v486 = vadd.f32 %v485, %v272
    %v487 = vadd.f32 %v486, %v278
    %v488 = vadd.f32 %v487, %v284
    %v489 = vadd.f32 %v488, %v290
    %v490 = vadd.f32 %v489, %v296
    %v491 = vadd.f32 %v490, %v302
    %v492 = vadd.f32 %v491, %v308
    %v493 = vadd.f32 %v492, %v314
    %v494 = vadd.f32 %v493, %v320
    %v495 = vadd.f32 %v494, %v326
    %v496 = vadd.f32 %v495, %v332
    %v497 = vadd.f32 %v496, %v338
    %v498 = vadd.f32 %v497, %v344
    %v499 = vadd.f32 %v498, %v350
    %v500 = vadd.f32 %v499, %v356
    %v501 = vadd.f32 %v500, %v362
    %v502 = vadd.f32 %v501, %v368
    %v503 = vadd.f32 %v502, %v374
    %v504 = vadd.f32 %v503, %v380
    %v505 = vadd.f32 %v504, %v386
    %v506 = vadd.f32 %v505, %v392
    %v507 = vadd.f32 %v506, %v398
    %v508 = vadd.f32 %v507, %v404
    %v509 = vadd.f32 %v508, %v410
    %v510 = vadd.f32 %v509, %v416
    %v511 = vadd.f32 %v510, %v422
    %v512 = vadd.f32 %v511, %v428
    %v513 = vadd.f32 %v512, %v434
    %v514 = vadd.f32 %v513, %v440
    %v515 = vadd.f32 %v514, %v446
    %v516 = vrot.slane %v515, 4
    %v517 = vadd.f32 %v515, %v516
    %v518 = vrot.slane %v517, 2
    %v519 = vadd.f32 %v517, %v518
    %v520 = vrot.slane %v519, 1
    %v521 = vadd.f32 %v519, %v520
    %v522 = vmul.f32 %v484, 0.00390625
    %v523 = vmul.f32 %v521, 0.00390625
    %v524 = vsub.f32 %v258, %v522
    %v525 = vsub.f32 %v260, %v523
    %v526 = vsub.f32 %v264, %v522
    %v527 = vsub.f32 %v266, %v523
    %v528 = vsub.f32 %v270, %v522
    %v529 = vsub.f32 %v272, %v523
    %v530 = vsub.f32 %v276, %v522
    %v531 = vsub.f32 %v278, %v523
    %v532 = vsub.f32 %v282, %v522
    %v533 = vsub.f32 %v284, %v523
    %v534 = vsub.f32 %v288, %v522
    %v535 = vsub.f32 %v290, %v523
    %v536 = vsub.f32 %v294, %v522
    %v537 = vsub.f32 %v296, %v523
    %v538 = vsub.f32 %v300, %v522
    %v539 = vsub.f32 %v302, %v523
    %v540 = vsub.f32 %v306, %v522
    %v541 = vsub.f32 %v308, %v523
    %v542 = vsub.f32 %v312, %v522
    %v543 = vsub.f32 %v314, %v523
    %v544 = vsub.f32 %v318, %v522
    %v545 = vsub.f32 %v320, %v523
    %v546 = vsub.f32 %v324, %v522
    %v547 = vsub.f32 %v326, %v523
    %v548 = vsub.f32 %v330, %v522
    %v549 = vsub.f32 %v332, %v523
    %v550 = vsub.f32 %v336, %v522
    %v551 = vsub.f32 %v338, %v523
    %v552 = vsub.f32 %v342, %v522
    %v553 = vsub.f32 %v344, %v523
    %v554 = vsub.f32 %v348, %v522
    %v555 = vsub.f32 %v350, %v523
    %v556 = vsub.f32 %v354, %v522
    %v557 = vsub.f32 %v356, %v523
    %v558 = vsub.f32 %v360, %v522
    %v559 = vsub.f32 %v362, %v523
    %v560 = vsub.f32 %v366, %v522
    %v561 = vsub.f32 %v368, %v523
    %v562 = vsub.f32 %v372, %v522
    %v563 = vsub.f32 %v374, %v523
    %v564 = vsub.f32 %v378, %v522
    %v565 = vsub.f32 %v380, %v523
    %v566 = vsub.f32 %v384, %v522
    %v567 = vsub.f32 %v386, %v523
    %v568 = vsub.f32 %v390, %v522
    %v569 = vsub.f32 %v392, %v523
    %v570 = vsub.f32 %v396, %v522
    %v571 = vsub.f32 %v398, %v523
    %v572 = vsub.f32 %v402, %v522
    %v573 = vsub.f32 %v404, %v523
    %v574 = vsub.f32 %v408, %v522
    %v575 = vsub.f32 %v410, %v523
    %v576 = vsub.f32 %v414, %v522
    %v577 = vsub.f32 %v416, %v523
    %v578 = vsub.f32 %v420, %v522
    %v579 = vsub.f32 %v422, %v523
    %v580 = vsub.f32 %v426, %v522
    %v581 = vsub.f32 %v428, %v523
    %v582 = vsub.f32 %v432, %v522
    %v583 = vsub.f32 %v434, %v523
    %v584 = vsub.f32 %v438, %v522
    %v585 = vsub.f32 %v440, %v523
    %v586 = vsub.f32 %v444, %v522
    %v587 = vsub.f32 %v446, %v523
    %v588 = vmul.f32 %v524, %v524
    %v589 = vmul.f32 %v525, %v525
    %v590 = vmul.f32 %v526, %v526
    %v591 = vmul.f32 %v527, %v527
    %v592 = vmul.f32 %v528, %v528
    %v593 = vmul.f32 %v529, %v529
    %v594 = vmul.f32 %v530, %v530
    %v595 = vmul.f32 %v531, %v531
    %v596 = vmul.f32 %v532, %v532
    %v597 = vmul.f32 %v533, %v533
    %v598 = vmul.f32 %v534, %v534
    %v599 = vmul.f32 %v535, %v535
    %v600 = vmul.f32 %v536, %v536
    %v601 = vmul.f32 %v537, %v537
    %v602 = vmul.f32 %v538, %v538
    %v603 = vmul.f32 %v539, %v539
    %v604 = vmul.f32 %v540, %v540
    %v605 = vmul.f32 %v541, %v541
    %v606 = vmul.f32 %v542, %v542
    %v607 = vmul.f32 %v543, %v543
    %v608 = vmul.f32 %v544, %v544
    %v609 = vmul.f32 %v545, %v545
    %v610 = vmul.f32 %v546, %v546
    %v611 = vmul.f32 %v547, %v547
    %v612 = vmul.f32 %v548, %v548
    %v613 = vmul.f32 %v549, %v549
    %v614 = vmul.f32 %v550, %v550
    %v615 = vmul.f32 %v551, %v551
    %v616 = vmul.f32 %v552, %v552
    %v617 = vmul.f32 %v553, %v553
    %v618 = vmul.f32 %v554, %v554
    %v619 = vmul.f32 %v555, %v555
    %v620 = vmul.f32 %v556, %v556
    %v621 = vmul.f32 %v557, %v557
    %v622 = vmul.f32 %v558, %v558
    %v623 = vmul.f32 %v559, %v559
    %v624 = vmul.f32 %v560, %v560
    %v625 = vmul.f32 %v561, %v561
    %v626 = vmul.f32 %v562, %v562
    %v627 = vmul.f32 %v563, %v563
    %v628 = vmul.f32 %v564, %v564
    %v629 = vmul.f32 %v565, %v565
    %v630 = vmul.f32 %v566, %v566
    %v631 = vmul.f32 %v567, %v567
    %v632 = vmul.f32 %v568, %v568
    %v633 = vmul.f32 %v569, %v569
    %v634 = vmul.f32 %v570, %v570
    %v635 = vmul.f32 %v571, %v571
    %v636 = vmul.f32 %v572, %v572
    %v637 = vmul.f32 %v573, %v573
    %v638 = vmul.f32 %v574, %v574
    %v639 = vmul.f32 %v575, %v575
    %v640 = vmul.f32 %v576, %v576
    %v641 = vmul.f32 %v577, %v577
    %v642 = vmul.f32 %v578, %v578
    %v643 = vmul.f32 %v579, %v579
    %v644 = vmul.f32 %v580, %v580
    %v645 = vmul.f32 %v581, %v581
    %v646 = vmul.f32 %v582, %v582
    %v647 = vmul.f32 %v583, %v583
    %v648 = vmul.f32 %v584, %v584
    %v649 = vmul.f32 %v585, %v585
    %v650 = vmul.f32 %v586, %v586
    %v651 = vmul.f32 %v587, %v587
    %v652 = vadd.f32 %v588, %v590
    %v653 = vadd.f32 %v652, %v592
    %v654 = vadd.f32 %v653, %v594
    %v655 = vadd.f32 %v654, %v596
    %v656 = vadd.f32 %v655, %v598
    %v657 = vadd.f32 %v656, %v600
    %v658 = vadd.f32 %v657, %v602
    %v659 = vadd.f32 %v658, %v604
    %v660 = vadd.f32 %v659, %v606
    %v661 = vadd.f32 %v660, %v608
    %v662 = vadd.f32 %v661, %v610
    %v663 = vadd.f32 %v662, %v612
    %v664 = vadd.f32 %v663, %v614
    %v665 = vadd.f32 %v664, %v616
    %v666 = vadd.f32 %v665, %v618
    %v667 = vadd.f32 %v666, %v620
    %v668 = vadd.f32 %v667, %v622
    %v669 = vadd.f32 %v668, %v624
    %v670 = vadd.f32 %v669, %v626
    %v671 = vadd.f32 %v670, %v628
    %v672 = vadd.f32 %v671, %v630
    %v673 = vadd.f32 %v672, %v632
    %v674 = vadd.f32 %v673, %v634
    %v675 = vadd.f32 %v674, %v636
    %v676 = vadd.f32 %v675, %v638
    %v677 = vadd.f32 %v676, %v640
    %v678 = vadd.f32 %v677, %v642
    %v679 = vadd.f32 %v678, %v644
    %v680 = vadd.f32 %v679, %v646
    %v681 = vadd.f32 %v680, %v648
    %v682 = vadd.f32 %v681, %v650
    %v683 = vrot.slane %v682, 4
    %v684 = vadd.f32 %v682, %v683
    %v685 = vrot.slane %v684, 2
    %v686 = vadd.f32 %v684, %v685
    %v687 = vrot.slane %v686, 1
    %v688 = vadd.f32 %v686, %v687
    %v689 = vadd.f32 %v589, %v591
    %v690 = vadd.f32 %v689, %v593
    %v691 = vadd.f32 %v690, %v595
    %v692 = vadd.f32 %v691, %v597
    %v693 = vadd.f32 %v692, %v599
    %v694 = vadd.f32 %v693, %v601
    %v695 = vadd.f32 %v694, %v603
    %v696 = vadd.f32 %v695, %v605
    %v697 = vadd.f32 %v696, %v607
    %v698 = vadd.f32 %v697, %v609
    %v699 = vadd.f32 %v698, %v611
    %v700 = vadd.f32 %v699, %v613
    %v701 = vadd.f32 %v700, %v615
    %v702 = vadd.f32 %v701, %v617
    %v703 = vadd.f32 %v702, %v619
    %v704 = vadd.f32 %v703, %v621
    %v705 = vadd.f32 %v704, %v623
    %v706 = vadd.f32 %v705, %v625
    %v707 = vadd.f32 %v706, %v627
    %v708 = vadd.f32 %v707, %v629
    %v709 = vadd.f32 %v708, %v631
    %v710 = vadd.f32 %v709, %v633
    %v711 = vadd.f32 %v710, %v635
    %v712 = vadd.f32 %v711, %v637
    %v713 = vadd.f32 %v712, %v639
    %v714 = vadd.f32 %v713, %v641
    %v715 = vadd.f32 %v714, %v643
    %v716 = vadd.f32 %v715, %v645
    %v717 = vadd.f32 %v716, %v647
    %v718 = vadd.f32 %v717, %v649
    %v719 = vadd.f32 %v718, %v651
    %v720 = vrot.slane %v719, 4
    %v721 = vadd.f32 %v719, %v720
    %v722 = vrot.slane %v721, 2
    %v723 = vadd.f32 %v721, %v722
    %v724 = vrot.slane %v723, 1
    %v725 = vadd.f32 %v723, %v724
    %v726 = vmul.f32 %v688, 0.00390625
    %v727 = vmul.f32 %v725, 0.00390625
    %v728 = vld [vmem:[%s3] sm:$0x3]
    %v729 = vadd.f32 %v726, 1e-05
    %v730 = vadd.f32 %v727, 1e-05
    %v731 = vrsqrt.pop %v729
    %v732 = vrsqrt.pop %v730
    %v735 = vcombine.low %v731, %v732
    %v737 = vunpack.c.l.s4 1966171168
    %v738 = vunpack.c.0.s8 %v737
    %v739 = vlaneseq
    %v740 = vshrl.u32 %v739, 7
    %v741 = vsub.s32 %v738, %v740
    %v742 = vrot.slane %v735, %v741
    %v744 = vunpack.c.l.s4 1966171168
    %v745 = vunpack.c.0.s8 %v744
    %v746 = vlaneseq
    %v747 = vshrl.u32 %v746, 7
    %v748 = vsub.s32 %v745, %v747
    %v749 = vrot.slane %v742, %v748
    %v751 = vmul.f32 %v728, %v749
    %v753 = vlaneseq
    %v754 = vshrl.u32 %v753, 7
    %v755 = vsub.s32 0, %v754
    %v756 = vrot.slane %v751, %v755
    %v757 = vlaneseq
    %v758 = vshrl.u32 %v757, 7
    %v759 = vsub.s32 1, %v758
    %v760 = vrot.slane %v751, %v759
    %v763 = vmul.f32 %v524, %v756
    %v764 = vmul.f32 %v525, %v760
    %v765 = vmul.f32 %v526, %v756
    %v766 = vmul.f32 %v527, %v760
    %v767 = vmul.f32 %v528, %v756
    %v768 = vmul.f32 %v529, %v760
    %v769 = vmul.f32 %v530, %v756
    %v770 = vmul.f32 %v531, %v760
    %v771 = vmul.f32 %v532, %v756
    %v772 = vmul.f32 %v533, %v760
    %v773 = vmul.f32 %v534, %v756
    %v774 = vmul.f32 %v535, %v760
    %v775 = vmul.f32 %v536, %v756
    %v776 = vmul.f32 %v537, %v760
    %v777 = vmul.f32 %v538, %v756
    %v778 = vmul.f32 %v539, %v760
    %v779 = vmul.f32 %v540, %v756
    %v780 = vmul.f32 %v541, %v760
    %v781 = vmul.f32 %v542, %v756
    %v782 = vmul.f32 %v543, %v760
    %v783 = vmul.f32 %v544, %v756
    %v784 = vmul.f32 %v545, %v760
    %v785 = vmul.f32 %v546, %v756
    %v786 = vmul.f32 %v547, %v760
    %v787 = vmul.f32 %v548, %v756
    %v788 = vmul.f32 %v549, %v760
    %v789 = vmul.f32 %v550, %v756
    %v790 = vmul.f32 %v551, %v760
    %v791 = vmul.f32 %v552, %v756
    %v792 = vmul.f32 %v553, %v760
    %v793 = vmul.f32 %v554, %v756
    %v794 = vmul.f32 %v555, %v760
    %v795 = vmul.f32 %v556, %v756
    %v796 = vmul.f32 %v557, %v760
    %v797 = vmul.f32 %v558, %v756
    %v798 = vmul.f32 %v559, %v760
    %v799 = vmul.f32 %v560, %v756
    %v800 = vmul.f32 %v561, %v760
    %v801 = vmul.f32 %v562, %v756
    %v802 = vmul.f32 %v563, %v760
    %v803 = vmul.f32 %v564, %v756
    %v804 = vmul.f32 %v565, %v760
    %v805 = vmul.f32 %v566, %v756
    %v806 = vmul.f32 %v567, %v760
    %v807 = vmul.f32 %v568, %v756
    %v808 = vmul.f32 %v569, %v760
    %v809 = vmul.f32 %v570, %v756
    %v810 = vmul.f32 %v571, %v760
    %v811 = vmul.f32 %v572, %v756
    %v812 = vmul.f32 %v573, %v760
    %v813 = vmul.f32 %v574, %v756
    %v814 = vmul.f32 %v575, %v760
    %v815 = vmul.f32 %v576, %v756
    %v816 = vmul.f32 %v577, %v760
    %v817 = vmul.f32 %v578, %v756
    %v818 = vmul.f32 %v579, %v760
    %v819 = vmul.f32 %v580, %v756
    %v820 = vmul.f32 %v581, %v760
    %v821 = vmul.f32 %v582, %v756
    %v822 = vmul.f32 %v583, %v760
    %v823 = vmul.f32 %v584, %v756
    %v824 = vmul.f32 %v585, %v760
    %v825 = vmul.f32 %v586, %v756
    %v826 = vmul.f32 %v587, %v760
    %v827 = vld [vmem:[%s4] sm:$0x3]
    %v829 = vlaneseq
    %v830 = vshrl.u32 %v829, 7
    %v831 = vsub.s32 0, %v830
    %v832 = vrot.slane %v827, %v831
    %v833 = vlaneseq
    %v834 = vshrl.u32 %v833, 7
    %v835 = vsub.s32 1, %v834
    %v836 = vrot.slane %v827, %v835
    %v839 = vadd.f32 %v763, %v832
    %v840 = vadd.f32 %v764, %v836
    %v841 = vadd.f32 %v765, %v832
    %v842 = vadd.f32 %v766, %v836
    %v843 = vadd.f32 %v767, %v832
    %v844 = vadd.f32 %v768, %v836
    %v845 = vadd.f32 %v769, %v832
    %v846 = vadd.f32 %v770, %v836
    %v847 = vadd.f32 %v771, %v832
    %v848 = vadd.f32 %v772, %v836
    %v849 = vadd.f32 %v773, %v832
    %v850 = vadd.f32 %v774, %v836
    %v851 = vadd.f32 %v775, %v832
    %v852 = vadd.f32 %v776, %v836
    %v853 = vadd.f32 %v777, %v832
    %v854 = vadd.f32 %v778, %v836
    %v855 = vadd.f32 %v779, %v832
    %v856 = vadd.f32 %v780, %v836
    %v857 = vadd.f32 %v781, %v832
    %v858 = vadd.f32 %v782, %v836
    %v859 = vadd.f32 %v783, %v832
    %v860 = vadd.f32 %v784, %v836
    %v861 = vadd.f32 %v785, %v832
    %v862 = vadd.f32 %v786, %v836
    %v863 = vadd.f32 %v787, %v832
    %v864 = vadd.f32 %v788, %v836
    %v865 = vadd.f32 %v789, %v832
    %v866 = vadd.f32 %v790, %v836
    %v867 = vadd.f32 %v791, %v832
    %v868 = vadd.f32 %v792, %v836
    %v869 = vadd.f32 %v793, %v832
    %v870 = vadd.f32 %v794, %v836
    %v871 = vadd.f32 %v795, %v832
    %v872 = vadd.f32 %v796, %v836
    %v873 = vadd.f32 %v797, %v832
    %v874 = vadd.f32 %v798, %v836
    %v875 = vadd.f32 %v799, %v832
    %v876 = vadd.f32 %v800, %v836
    %v877 = vadd.f32 %v801, %v832
    %v878 = vadd.f32 %v802, %v836
    %v879 = vadd.f32 %v803, %v832
    %v880 = vadd.f32 %v804, %v836
    %v881 = vadd.f32 %v805, %v832
    %v882 = vadd.f32 %v806, %v836
    %v883 = vadd.f32 %v807, %v832
    %v884 = vadd.f32 %v808, %v836
    %v885 = vadd.f32 %v809, %v832
    %v886 = vadd.f32 %v810, %v836
    %v887 = vadd.f32 %v811, %v832
    %v888 = vadd.f32 %v812, %v836
    %v889 = vadd.f32 %v813, %v832
    %v890 = vadd.f32 %v814, %v836
    %v891 = vadd.f32 %v815, %v832
    %v892 = vadd.f32 %v816, %v836
    %v893 = vadd.f32 %v817, %v832
    %v894 = vadd.f32 %v818, %v836
    %v895 = vadd.f32 %v819, %v832
    %v896 = vadd.f32 %v820, %v836
    %v897 = vadd.f32 %v821, %v832
    %v898 = vadd.f32 %v822, %v836
    %v899 = vadd.f32 %v823, %v832
    %v900 = vadd.f32 %v824, %v836
    %v901 = vadd.f32 %v825, %v832
    %v902 = vadd.f32 %v826, %v836
    %v903 = vmax.f32 %v839, 0.0
    %v904 = vmax.f32 %v840, 0.0
    %v905 = vmax.f32 %v841, 0.0
    %v906 = vmax.f32 %v842, 0.0
    %v907 = vmax.f32 %v843, 0.0
    %v908 = vmax.f32 %v844, 0.0
    %v909 = vmax.f32 %v845, 0.0
    %v910 = vmax.f32 %v846, 0.0
    %v911 = vmax.f32 %v847, 0.0
    %v912 = vmax.f32 %v848, 0.0
    %v913 = vmax.f32 %v849, 0.0
    %v914 = vmax.f32 %v850, 0.0
    %v915 = vmax.f32 %v851, 0.0
    %v916 = vmax.f32 %v852, 0.0
    %v917 = vmax.f32 %v853, 0.0
    %v918 = vmax.f32 %v854, 0.0
    %v919 = vmax.f32 %v855, 0.0
    %v920 = vmax.f32 %v856, 0.0
    %v921 = vmax.f32 %v857, 0.0
    %v922 = vmax.f32 %v858, 0.0
    %v923 = vmax.f32 %v859, 0.0
    %v924 = vmax.f32 %v860, 0.0
    %v925 = vmax.f32 %v861, 0.0
    %v926 = vmax.f32 %v862, 0.0
    %v927 = vmax.f32 %v863, 0.0
    %v928 = vmax.f32 %v864, 0.0
    %v929 = vmax.f32 %v865, 0.0
    %v930 = vmax.f32 %v866, 0.0
    %v931 = vmax.f32 %v867, 0.0
    %v932 = vmax.f32 %v868, 0.0
    %v933 = vmax.f32 %v869, 0.0
    %v934 = vmax.f32 %v870, 0.0
    %v935 = vmax.f32 %v871, 0.0
    %v936 = vmax.f32 %v872, 0.0
    %v937 = vmax.f32 %v873, 0.0
    %v938 = vmax.f32 %v874, 0.0
    %v939 = vmax.f32 %v875, 0.0
    %v940 = vmax.f32 %v876, 0.0
    %v941 = vmax.f32 %v877, 0.0
    %v942 = vmax.f32 %v878, 0.0
    %v943 = vmax.f32 %v879, 0.0
    %v944 = vmax.f32 %v880, 0.0
    %v945 = vmax.f32 %v881, 0.0
    %v946 = vmax.f32 %v882, 0.0
    %v947 = vmax.f32 %v883, 0.0
    %v948 = vmax.f32 %v884, 0.0
    %v949 = vmax.f32 %v885, 0.0
    %v950 = vmax.f32 %v886, 0.0
    %v951 = vmax.f32 %v887, 0.0
    %v952 = vmax.f32 %v888, 0.0
    %v953 = vmax.f32 %v889, 0.0
    %v954 = vmax.f32 %v890, 0.0
    %v955 = vmax.f32 %v891, 0.0
    %v956 = vmax.f32 %v892, 0.0
    %v957 = vmax.f32 %v893, 0.0
    %v958 = vmax.f32 %v894, 0.0
    %v959 = vmax.f32 %v895, 0.0
    %v960 = vmax.f32 %v896, 0.0
    %v961 = vmax.f32 %v897, 0.0
    %v962 = vmax.f32 %v898, 0.0
    %v963 = vmax.f32 %v899, 0.0
    %v964 = vmax.f32 %v900, 0.0
    %v965 = vmax.f32 %v901, 0.0
    %v966 = vmax.f32 %v902, 0.0
    %v967 = vld [vmem:[%s5] sm:$0xff]
    %v968 = vld [vmem:[%s5 + $0x8] sm:$0xff]
    %v969 = vld [vmem:[%s5 + $0x10] sm:$0xff]
    %v970 = vld [vmem:[%s5 + $0x18] sm:$0xff]
    %v971 = vld [vmem:[%s5 + $0x20] sm:$0xff]
    %v972 = vld [vmem:[%s5 + $0x28] sm:$0xff]
    %v973 = vld [vmem:[%s5 + $0x30] sm:$0xff]
    %v974 = vld [vmem:[%s5 + $0x38] sm:$0xff]
    %v975 = vld [vmem:[%s5 + $0x40] sm:$0xff]
    %v976 = vld [vmem:[%s5 + $0x48] sm:$0xff]
    %v977 = vld [vmem:[%s5 + $0x50] sm:$0xff]
    %v978 = vld [vmem:[%s5 + $0x58] sm:$0xff]
    %v979 = vld [vmem:[%s5 + $0x60] sm:$0xff]
    %v980 = vld [vmem:[%s5 + $0x68] sm:$0xff]
    %v981 = vld [vmem:[%s5 + $0x70] sm:$0xff]
    %v982 = vld [vmem:[%s5 + $0x78] sm:$0xff]
    %v983 = vld [vmem:[%s5 + $0x80] sm:$0xff]
    %v984 = vld [vmem:[%s5 + $0x88] sm:$0xff]
    %v985 = vld [vmem:[%s5 + $0x90] sm:$0xff]
    %v986 = vld [vmem:[%s5 + $0x98] sm:$0xff]
    %v987 = vld [vmem:[%s5 + $0xa0] sm:$0xff]
    %v988 = vld [vmem:[%s5 + $0xa8] sm:$0xff]
    %v989 = vld [vmem:[%s5 + $0xb0] sm:$0xff]
    %v990 = vld [vmem:[%s5 + $0xb8] sm:$0xff]
    %v991 = vld [vmem:[%s5 + $0xc0] sm:$0xff]
    %v992 = vld [vmem:[%s5 + $0xc8] sm:$0xff]
    %v993 = vld [vmem:[%s5 + $0xd0] sm:$0xff]
    %v994 = vld [vmem:[%s5 + $0xd8] sm:$0xff]
    %v995 = vld [vmem:[%s5 + $0xe0] sm:$0xff]
    %v996 = vld [vmem:[%s5 + $0xe8] sm:$0xff]
    %v997 = vld [vmem:[%s5 + $0xf0] sm:$0xff]
    %v998 = vld [vmem:[%s5 + $0xf8] sm:$0xff]
    %v999 = vld [vmem:[%s6] sm:$0x1]
    %v1001 = vlaneseq
    %v1002 = vshrl.u32 %v1001, 7
    %v1003 = vsub.s32 0, %v1002
    %v1004 = vrot.slane %v999, %v1003
    %1006 = vmatprep.subr.mxu0 0.0
    %1007 = vmatpush1.msra.mxu0 %v967
    %1008 = vmatprep.subr.mxu0 0.0
    %1009 = vmatpush1.msra.mxu0 %v968
    %1010 = vmatprep.subr.mxu0 0.0
    %1011 = vmatpush1.msra.mxu0 %v969
    %1012 = vmatprep.subr.mxu0 0.0
    %1013 = vmatpush1.msra.mxu0 %v970
    %1014 = vmatprep.subr.mxu0 0.0
    %1015 = vmatpush1.msra.mxu0 %v971
    %1016 = vmatprep.subr.mxu0 0.0
    %1017 = vmatpush1.msra.mxu0 %v972
    %1018 = vmatprep.subr.mxu0 0.0
    %1019 = vmatpush1.msra.mxu0 %v973
    %1020 = vmatprep.subr.mxu0 0.0
    %1021 = vmatpush1.msra.mxu0 %v974
    %1022 = vmatprep.subr.mxu0 0.0
    %1023 = vmatpush1.msra.mxu0 %v975
    %1024 = vmatprep.subr.mxu0 0.0
    %1025 = vmatpush1.msra.mxu0 %v976
    %1026 = vmatprep.subr.mxu0 0.0
    %1027 = vmatpush1.msra.mxu0 %v977
    %1028 = vmatprep.subr.mxu0 0.0
    %1029 = vmatpush1.msra.mxu0 %v978
    %1030 = vmatprep.subr.mxu0 0.0
    %1031 = vmatpush1.msra.mxu0 %v979
    %1032 = vmatprep.subr.mxu0 0.0
    %1033 = vmatpush1.msra.mxu0 %v980
    %1034 = vmatprep.subr.mxu0 0.0
    %1035 = vmatpush1.msra.mxu0 %v981
    %1036 = vmatprep.subr.mxu0 0.0
    %1037 = vmatpush1.msra.mxu0 %v982
    %1038 = vmatprep.subr.mxu0 0.0
    %1039 = vmatpush1.msra.mxu0 %v983
    %1040 = vmatprep.subr.mxu0 0.0
    %1041 = vmatpush1.msra.mxu0 %v984
    %1042 = vmatprep.subr.mxu0 0.0
    %1043 = vmatpush1.msra.mxu0 %v985
    %1044 = vmatprep.subr.mxu0 0.0
    %1045 = vmatpush1.msra.mxu0 %v986
    %1046 = vmatprep.subr.mxu0 0.0
    %1047 = vmatpush1.msra.mxu0 %v987
    %1048 = vmatprep.subr.mxu0 0.0
    %1049 = vmatpush1.msra.mxu0 %v988
    %1050 = vmatprep.subr.mxu0 0.0
    %1051 = vmatpush1.msra.mxu0 %v989
    %1052 = vmatprep.subr.mxu0 0.0
    %1053 = vmatpush1.msra.mxu0 %v990
    %1054 = vmatprep.subr.mxu0 0.0
    %1055 = vmatpush1.msra.mxu0 %v991
    %1056 = vmatprep.subr.mxu0 0.0
    %1057 = vmatpush1.msra.mxu0 %v992
    %1058 = vmatprep.subr.mxu0 0.0
    %1059 = vmatpush1.msra.mxu0 %v993
    %1060 = vmatprep.subr.mxu0 0.0
    %1061 = vmatpush1.msra.mxu0 %v994
    %1062 = vmatprep.subr.mxu0 0.0
    %1063 = vmatpush1.msra.mxu0 %v995
    %1064 = vmatprep.subr.mxu0 0.0
    %1065 = vmatpush1.msra.mxu0 %v996
    %1066 = vmatprep.subr.mxu0 0.0
    %1067 = vmatpush1.msra.mxu0 %v997
    %1068 = vmatprep.subr.mxu0 0.0
    %1069 = vmatpush1.msra.mxu0 %v998
    %1070 = vmatprep.mubr.f32.mxu0 %v904
    %1071 = vmatmul.mubr.f32.gmra.mrb[0].mxu0 %v903
    %v1072 = vpop.f32.mrb[0].mxu0
    %v1073 = vadd.f32 %v1004, %v1072
    %v1074 = vpop.f32.mrb[0].mxu0
    %1075 = vmatprep.mubr.f32.mxu0 %v906
    %1076 = vmatmul.mubr.f32.gmra.mrb[0].mxu0 %v905
    %v1077 = vpop.f32.mrb[0].mxu0
    %v1078 = vadd.f32 %v1004, %v1077
    %v1079 = vpop.f32.mrb[0].mxu0
    %1080 = vmatprep.mubr.f32.mxu0 %v908
    %1081 = vmatmul.mubr.f32.gmra.mrb[0].mxu0 %v907
    %v1082 = vpop.f32.mrb[0].mxu0
    %v1083 = vadd.f32 %v1004, %v1082
    %v1084 = vpop.f32.mrb[0].mxu0
    %1085 = vmatprep.mubr.f32.mxu0 %v910
    %1086 = vmatmul.mubr.f32.gmra.mrb[0].mxu0 %v909
    %v1087 = vpop.f32.mrb[0].mxu0
    %v1088 = vadd.f32 %v1004, %v1087
    %v1089 = vpop.f32.mrb[0].mxu0
    %1090 = vmatprep.mubr.f32.mxu0 %v912
    %1091 = vmatmul.mubr.f32.gmra.mrb[0].mxu0 %v911
    %v1092 = vpop.f32.mrb[0].mxu0
    %v1093 = vadd.f32 %v1004, %v1092
    %v1094 = vpop.f32.mrb[0].mxu0
    %1095 = vmatprep.mubr.f32.mxu0 %v914
    %1096 = vmatmul.mubr.f32.gmra.mrb[0].mxu0 %v913
    %v1097 = vpop.f32.mrb[0].mxu0
    %v1098 = vadd.f32 %v1004, %v1097
    %v1099 = vpop.f32.mrb[0].mxu0
    %1100 = vmatprep.mubr.f32.mxu0 %v916
    %1101 = vmatmul.mubr.f32.gmra.mrb[0].mxu0 %v915
    %v1102 = vpop.f32.mrb[0].mxu0
    %v1103 = vadd.f32 %v1004, %v1102
    %v1104 = vpop.f32.mrb[0].mxu0
    %1105 = vmatprep.mubr.f32.mxu0 %v918
    %1106 = vmatmul.mubr.f32.gmra.mrb[0].mxu0 %v917
    %v1107 = vpop.f32.mrb[0].mxu0
    %v1108 = vadd.f32 %v1004, %v1107
    %v1109 = vpop.f32.mrb[0].mxu0
    %1110 = vmatprep.mubr.f32.mxu0 %v920
    %1111 = vmatmul.mubr.f32.gmra.mrb[0].mxu0 %v919
    %v1112 = vpop.f32.mrb[0].mxu0
    %v1113 = vadd.f32 %v1004, %v1112
    %v1114 = vpop.f32.mrb[0].mxu0
    %1115 = vmatprep.mubr.f32.mxu0 %v922
    %1116 = vmatmul.mubr.f32.gmra.mrb[0].mxu0 %v921
    %v1117 = vpop.f32.mrb[0].mxu0
    %v1118 = vadd.f32 %v1004, %v1117
    %v1119 = vpop.f32.mrb[0].mxu0
    %1120 = vmatprep.mubr.f32.mxu0 %v924
    %1121 = vmatmul.mubr.f32.gmra.mrb[0].mxu0 %v923
    %v1122 = vpop.f32.mrb[0].mxu0
    %v1123 = vadd.f32 %v1004, %v1122
    %v1124 = vpop.f32.mrb[0].mxu0
    %1125 = vmatprep.mubr.f32.mxu0 %v926
    %1126 = vmatmul.mubr.f32.gmra.mrb[0].mxu0 %v925
    %v1127 = vpop.f32.mrb[0].mxu0
    %v1128 = vadd.f32 %v1004, %v1127
    %v1129 = vpop.f32.mrb[0].mxu0
    %1130 = vmatprep.mubr.f32.mxu0 %v928
    %1131 = vmatmul.mubr.f32.gmra.mrb[0].mxu0 %v927
    %v1132 = vpop.f32.mrb[0].mxu0
    %v1133 = vadd.f32 %v1004, %v1132
    %v1134 = vpop.f32.mrb[0].mxu0
    %1135 = vmatprep.mubr.f32.mxu0 %v930
    %1136 = vmatmul.mubr.f32.gmra.mrb[0].mxu0 %v929
    %v1137 = vpop.f32.mrb[0].mxu0
    %v1138 = vadd.f32 %v1004, %v1137
    %v1139 = vpop.f32.mrb[0].mxu0
    %1140 = vmatprep.mubr.f32.mxu0 %v932
    %1141 = vmatmul.mubr.f32.gmra.mrb[0].mxu0 %v931
    %v1142 = vpop.f32.mrb[0].mxu0
    %v1143 = vadd.f32 %v1004, %v1142
    %v1144 = vpop.f32.mrb[0].mxu0
    %1145 = vmatprep.mubr.f32.mxu0 %v934
    %1146 = vmatmul.mubr.f32.gmra.mrb[0].mxu0 %v933
    %v1147 = vpop.f32.mrb[0].mxu0
    %v1148 = vadd.f32 %v1004, %v1147
    %v1149 = vpop.f32.mrb[0].mxu0
    %1150 = vmatprep.mubr.f32.mxu0 %v936
    %1151 = vmatmul.mubr.f32.gmra.mrb[0].mxu0 %v935
    %v1152 = vpop.f32.mrb[0].mxu0
    %v1153 = vadd.f32 %v1004, %v1152
    %v1154 = vpop.f32.mrb[0].mxu0
    %1155 = vmatprep.mubr.f32.mxu0 %v938
    %1156 = vmatmul.mubr.f32.gmra.mrb[0].mxu0 %v937
    %v1157 = vpop.f32.mrb[0].mxu0
    %v1158 = vadd.f32 %v1004, %v1157
    %v1159 = vpop.f32.mrb[0].mxu0
    %1160 = vmatprep.mubr.f32.mxu0 %v940
    %1161 = vmatmul.mubr.f32.gmra.mrb[0].mxu0 %v939
    %v1162 = vpop.f32.mrb[0].mxu0
    %v1163 = vadd.f32 %v1004, %v1162
    %v1164 = vpop.f32.mrb[0].mxu0
    %1165 = vmatprep.mubr.f32.mxu0 %v942
    %1166 = vmatmul.mubr.f32.gmra.mrb[0].mxu0 %v941
    %v1167 = vpop.f32.mrb[0].mxu0
    %v1168 = vadd.f32 %v1004, %v1167
    %v1169 = vpop.f32.mrb[0].mxu0
    %1170 = vmatprep.mubr.f32.mxu0 %v944
    %1171 = vmatmul.mubr.f32.gmra.mrb[0].mxu0 %v943
    %v1172 = vpop.f32.mrb[0].mxu0
    %v1173 = vadd.f32 %v1004, %v1172
    %v1174 = vpop.f32.mrb[0].mxu0
    %1175 = vmatprep.mubr.f32.mxu0 %v946
    %1176 = vmatmul.mubr.f32.gmra.mrb[0].mxu0 %v945
    %v1177 = vpop.f32.mrb[0].mxu0
    %v1178 = vadd.f32 %v1004, %v1177
    %v1179 = vpop.f32.mrb[0].mxu0
    %1180 = vmatprep.mubr.f32.mxu0 %v948
    %1181 = vmatmul.mubr.f32.gmra.mrb[0].mxu0 %v947
    %v1182 = vpop.f32.mrb[0].mxu0
    %v1183 = vadd.f32 %v1004, %v1182
    %v1184 = vpop.f32.mrb[0].mxu0
    %1185 = vmatprep.mubr.f32.mxu0 %v950
    %1186 = vmatmul.mubr.f32.gmra.mrb[0].mxu0 %v949
    %v1187 = vpop.f32.mrb[0].mxu0
    %v1188 = vadd.f32 %v1004, %v1187
    %v1189 = vpop.f32.mrb[0].mxu0
    %1190 = vmatprep.mubr.f32.mxu0 %v952
    %1191 = vmatmul.mubr.f32.gmra.mrb[0].mxu0 %v951
    %v1192 = vpop.f32.mrb[0].mxu0
    %v1193 = vadd.f32 %v1004, %v1192
    %v1194 = vpop.f32.mrb[0].mxu0
    %1195 = vmatprep.mubr.f32.mxu0 %v954
    %1196 = vmatmul.mubr.f32.gmra.mrb[0].mxu0 %v953
    %v1197 = vpop.f32.mrb[0].mxu0
    %v1198 = vadd.f32 %v1004, %v1197
    %v1199 = vpop.f32.mrb[0].mxu0
    %1200 = vmatprep.mubr.f32.mxu0 %v956
    %1201 = vmatmul.mubr.f32.gmra.mrb[0].mxu0 %v955
    %v1202 = vpop.f32.mrb[0].mxu0
    %v1203 = vadd.f32 %v1004, %v1202
    %v1204 = vpop.f32.mrb[0].mxu0
    %1205 = vmatprep.mubr.f32.mxu0 %v958
    %1206 = vmatmul.mubr.f32.gmra.mrb[0].mxu0 %v957
    %v1207 = vpop.f32.mrb[0].mxu0
    %v1208 = vadd.f32 %v1004, %v1207
    %v1209 = vpop.f32.mrb[0].mxu0
    %1210 = vmatprep.mubr.f32.mxu0 %v960
    %1211 = vmatmul.mubr.f32.gmra.mrb[0].mxu0 %v959
    %v1212 = vpop.f32.mrb[0].mxu0
    %v1213 = vadd.f32 %v1004, %v1212
    %v1214 = vpop.f32.mrb[0].mxu0
    %1215 = vmatprep.mubr.f32.mxu0 %v962
    %1216 = vmatmul.mubr.f32.gmra.mrb[0].mxu0 %v961
    %v1217 = vpop.f32.mrb[0].mxu0
    %v1218 = vadd.f32 %v1004, %v1217
    %v1219 = vpop.f32.mrb[0].mxu0
    %1220 = vmatprep.mubr.f32.mxu0 %v964
    %1221 = vmatmul.mubr.f32.gmra.mrb[0].mxu0 %v963
    %v1222 = vpop.f32.mrb[0].mxu0
    %v1223 = vadd.f32 %v1004, %v1222
    %v1224 = vpop.f32.mrb[0].mxu0
    %1225 = vmatprep.mubr.f32.mxu0 %v966
    %1226 = vmatmul.mubr.f32.gmra.mrb[0].mxu0 %v965
    %v1227 = vpop.f32.mrb[0].mxu0
    %v1228 = vadd.f32 %v1004, %v1227
    %v1229 = vpop.f32.mrb[0].mxu0
    %1230 = vdwg.mxu0
    %1231 = vst [vmem:[#allocation3] sm:$0xff] %v1073
    %1232 = vst [vmem:[#allocation3 + $0x8] sm:$0xff] %v1078
    %1233 = vst [vmem:[#allocation3 + $0x10] sm:$0xff] %v1083
    %1234 = vst [vmem:[#allocation3 + $0x18] sm:$0xff] %v1088
    %1235 = vst [vmem:[#allocation3 + $0x20] sm:$0xff] %v1093
    %1236 = vst [vmem:[#allocation3 + $0x28] sm:$0xff] %v1098
    %1237 = vst [vmem:[#allocation3 + $0x30] sm:$0xff] %v1103
    %1238 = vst [vmem:[#allocation3 + $0x38] sm:$0xff] %v1108
    %1239 = vst [vmem:[#allocation3 + $0x40] sm:$0xff] %v1113
    %1240 = vst [vmem:[#allocation3 + $0x48] sm:$0xff] %v1118
    %1241 = vst [vmem:[#allocation3 + $0x50] sm:$0xff] %v1123
    %1242 = vst [vmem:[#allocation3 + $0x58] sm:$0xff] %v1128
    %1243 = vst [vmem:[#allocation3 + $0x60] sm:$0xff] %v1133
    %1244 = vst [vmem:[#allocation3 + $0x68] sm:$0xff] %v1138
    %1245 = vst [vmem:[#allocation3 + $0x70] sm:$0xff] %v1143
    %1246 = vst [vmem:[#allocation3 + $0x78] sm:$0xff] %v1148
    %1247 = vst [vmem:[#allocation3 + $0x80] sm:$0xff] %v1153
    %1248 = vst [vmem:[#allocation3 + $0x88] sm:$0xff] %v1158
    %1249 = vst [vmem:[#allocation3 + $0x90] sm:$0xff] %v1163
    %1250 = vst [vmem:[#allocation3 + $0x98] sm:$0xff] %v1168
    %1251 = vst [vmem:[#allocation3 + $0xa0] sm:$0xff] %v1173
    %1252 = vst [vmem:[#allocation3 + $0xa8] sm:$0xff] %v1178
    %1253 = vst [vmem:[#allocation3 + $0xb0] sm:$0xff] %v1183
    %1254 = vst [vmem:[#allocation3 + $0xb8] sm:$0xff] %v1188
    %1255 = vst [vmem:[#allocation3 + $0xc0] sm:$0xff] %v1193
    %1256 = vst [vmem:[#allocation3 + $0xc8] sm:$0xff] %v1198
    %1257 = vst [vmem:[#allocation3 + $0xd0] sm:$0xff] %v1203
    %1258 = vst [vmem:[#allocation3 + $0xd8] sm:$0xff] %v1208
    %1259 = vst [vmem:[#allocation3 + $0xe0] sm:$0xff] %v1213
    %1260 = vst [vmem:[#allocation3 + $0xe8] sm:$0xff] %v1218
    %1261 = vst [vmem:[#allocation3 + $0xf0] sm:$0xff] %v1223
    %1262 = vst [vmem:[#allocation3 + $0xf8] sm:$0xff] %v1228
    %v1263 = vld [vmem:[%s7] sm:$0x1]
    %v1264 = vld [vmem:[#allocation2] sm:$0x1]
    %v1266 = vlaneseq
    %v1267 = vshrl.u32 %v1266, 7
    %v1268 = vsub.s32 0, %v1267
    %v1269 = vrot.slane %v1263, %v1268
    %v1271 = vmul.f32 %v1073, %v1269
    %v1272 = vmul.f32 %v1078, %v1269
    %v1273 = vmul.f32 %v1083, %v1269
    %v1274 = vmul.f32 %v1088, %v1269
    %v1275 = vmul.f32 %v1093, %v1269
    %v1276 = vmul.f32 %v1098, %v1269
    %v1277 = vmul.f32 %v1103, %v1269
    %v1278 = vmul.f32 %v1108, %v1269
    %v1279 = vmul.f32 %v1113, %v1269
    %v1280 = vmul.f32 %v1118, %v1269
    %v1281 = vmul.f32 %v1123, %v1269
    %v1282 = vmul.f32 %v1128, %v1269
    %v1283 = vmul.f32 %v1133, %v1269
    %v1284 = vmul.f32 %v1138, %v1269
    %v1285 = vmul.f32 %v1143, %v1269
    %v1286 = vmul.f32 %v1148, %v1269
    %v1287 = vmul.f32 %v1153, %v1269
    %v1288 = vmul.f32 %v1158, %v1269
    %v1289 = vmul.f32 %v1163, %v1269
    %v1290 = vmul.f32 %v1168, %v1269
    %v1291 = vmul.f32 %v1173, %v1269
    %v1292 = vmul.f32 %v1178, %v1269
    %v1293 = vmul.f32 %v1183, %v1269
    %v1294 = vmul.f32 %v1188, %v1269
    %v1295 = vmul.f32 %v1193, %v1269
    %v1296 = vmul.f32 %v1198, %v1269
    %v1297 = vmul.f32 %v1203, %v1269
    %v1298 = vmul.f32 %v1208, %v1269
    %v1299 = vmul.f32 %v1213, %v1269
    %v1300 = vmul.f32 %v1218, %v1269
    %v1301 = vmul.f32 %v1223, %v1269
    %v1302 = vmul.f32 %v1228, %v1269
    %1303 = vadd.xlane.f32.xlu0 %v1271
    %v1304 = vpop.xlane.xlu0 %1303
    %1305 = vadd.xlane.f32.xlu0 %v1272
    %v1306 = vpop.xlane.xlu0 %1305
    %1307 = vadd.xlane.f32.xlu0 %v1273
    %v1308 = vpop.xlane.xlu0 %1307
    %1309 = vadd.xlane.f32.xlu0 %v1274
    %v1310 = vpop.xlane.xlu0 %1309
    %1311 = vadd.xlane.f32.xlu0 %v1275
    %v1312 = vpop.xlane.xlu0 %1311
    %1313 = vadd.xlane.f32.xlu0 %v1276
    %v1314 = vpop.xlane.xlu0 %1313
    %1315 = vadd.xlane.f32.xlu0 %v1277
    %v1316 = vpop.xlane.xlu0 %1315
    %1317 = vadd.xlane.f32.xlu0 %v1278
    %v1318 = vpop.xlane.xlu0 %1317
    %1319 = vadd.xlane.f32.xlu0 %v1279
    %v1320 = vpop.xlane.xlu0 %1319
    %1321 = vadd.xlane.f32.xlu0 %v1280
    %v1322 = vpop.xlane.xlu0 %1321
    %1323 = vadd.xlane.f32.xlu0 %v1281
    %v1324 = vpop.xlane.xlu0 %1323
    %1325 = vadd.xlane.f32.xlu0 %v1282
    %v1326 = vpop.xlane.xlu0 %1325
    %1327 = vadd.xlane.f32.xlu0 %v1283
    %v1328 = vpop.xlane.xlu0 %1327
    %1329 = vadd.xlane.f32.xlu0 %v1284
    %v1330 = vpop.xlane.xlu0 %1329
    %1331 = vadd.xlane.f32.xlu0 %v1285
    %v1332 = vpop.xlane.xlu0 %1331
    %1333 = vadd.xlane.f32.xlu0 %v1286
    %v1334 = vpop.xlane.xlu0 %1333
    %1335 = vadd.xlane.f32.xlu0 %v1287
    %v1336 = vpop.xlane.xlu0 %1335
    %1337 = vadd.xlane.f32.xlu0 %v1288
    %v1338 = vpop.xlane.xlu0 %1337
    %1339 = vadd.xlane.f32.xlu0 %v1289
    %v1340 = vpop.xlane.xlu0 %1339
    %1341 = vadd.xlane.f32.xlu0 %v1290
    %v1342 = vpop.xlane.xlu0 %1341
    %1343 = vadd.xlane.f32.xlu0 %v1291
    %v1344 = vpop.xlane.xlu0 %1343
    %1345 = vadd.xlane.f32.xlu0 %v1292
    %v1346 = vpop.xlane.xlu0 %1345
    %1347 = vadd.xlane.f32.xlu0 %v1293
    %v1348 = vpop.xlane.xlu0 %1347
    %1349 = vadd.xlane.f32.xlu0 %v1294
    %v1350 = vpop.xlane.xlu0 %1349
    %1351 = vadd.xlane.f32.xlu0 %v1295
    %v1352 = vpop.xlane.xlu0 %1351
    %1353 = vadd.xlane.f32.xlu0 %v1296
    %v1354 = vpop.xlane.xlu0 %1353
    %1355 = vadd.xlane.f32.xlu0 %v1297
    %v1356 = vpop.xlane.xlu0 %1355
    %1357 = vadd.xlane.f32.xlu0 %v1298
    %v1358 = vpop.xlane.xlu0 %1357
    %1359 = vadd.xlane.f32.xlu0 %v1299
    %v1360 = vpop.xlane.xlu0 %1359
    %1361 = vadd.xlane.f32.xlu0 %v1300
    %v1362 = vpop.xlane.xlu0 %1361
    %1363 = vadd.xlane.f32.xlu0 %v1301
    %v1364 = vpop.xlane.xlu0 %1363
    %1365 = vadd.xlane.f32.xlu0 %v1302
    %v1366 = vpop.xlane.xlu0 %1365
    %v1368 = vlaneseq
    %v1369 = vshrl.u32 %v1368, 7
    %v1370 = vsub.s32 0, %v1369
    %v1371 = vrot.slane %v1264, %v1370
    %v1373 = vadd.f32 %v1304, %v1371
    %v1374 = vadd.f32 %v1306, %v1371
    %v1375 = vadd.f32 %v1308, %v1371
    %v1376 = vadd.f32 %v1310, %v1371
    %v1377 = vadd.f32 %v1312, %v1371
    %v1378 = vadd.f32 %v1314, %v1371
    %v1379 = vadd.f32 %v1316, %v1371
    %v1380 = vadd.f32 %v1318, %v1371
    %v1381 = vadd.f32 %v1320, %v1371
    %v1382 = vadd.f32 %v1322, %v1371
    %v1383 = vadd.f32 %v1324, %v1371
    %v1384 = vadd.f32 %v1326, %v1371
    %v1385 = vadd.f32 %v1328, %v1371
    %v1386 = vadd.f32 %v1330, %v1371
    %v1387 = vadd.f32 %v1332, %v1371
    %v1388 = vadd.f32 %v1334, %v1371
    %v1389 = vadd.f32 %v1336, %v1371
    %v1390 = vadd.f32 %v1338, %v1371
    %v1391 = vadd.f32 %v1340, %v1371
    %v1392 = vadd.f32 %v1342, %v1371
    %v1393 = vadd.f32 %v1344, %v1371
    %v1394 = vadd.f32 %v1346, %v1371
    %v1395 = vadd.f32 %v1348, %v1371
    %v1396 = vadd.f32 %v1350, %v1371
    %v1397 = vadd.f32 %v1352, %v1371
    %v1398 = vadd.f32 %v1354, %v1371
    %v1399 = vadd.f32 %v1356, %v1371
    %v1400 = vadd.f32 %v1358, %v1371
    %v1401 = vadd.f32 %v1360, %v1371
    %v1402 = vadd.f32 %v1362, %v1371
    %v1403 = vadd.f32 %v1364, %v1371
    %v1404 = vadd.f32 %v1366, %v1371
    %v1405 = vxor.u32 %v1373, 2147483648
    %v1406 = vxor.u32 %v1374, 2147483648
    %v1407 = vxor.u32 %v1375, 2147483648
    %v1408 = vxor.u32 %v1376, 2147483648
    %v1409 = vxor.u32 %v1377, 2147483648
    %v1410 = vxor.u32 %v1378, 2147483648
    %v1411 = vxor.u32 %v1379, 2147483648
    %v1412 = vxor.u32 %v1380, 2147483648
    %v1413 = vxor.u32 %v1381, 2147483648
    %v1414 = vxor.u32 %v1382, 2147483648
    %v1415 = vxor.u32 %v1383, 2147483648
    %v1416 = vxor.u32 %v1384, 2147483648
    %v1417 = vxor.u32 %v1385, 2147483648
    %v1418 = vxor.u32 %v1386, 2147483648
    %v1419 = vxor.u32 %v1387, 2147483648
    %v1420 = vxor.u32 %v1388, 2147483648
    %v1421 = vxor.u32 %v1389, 2147483648
    %v1422 = vxor.u32 %v1390, 2147483648
    %v1423 = vxor.u32 %v1391, 2147483648
    %v1424 = vxor.u32 %v1392, 2147483648
    %v1425 = vxor.u32 %v1393, 2147483648
    %v1426 = vxor.u32 %v1394, 2147483648
    %v1427 = vxor.u32 %v1395, 2147483648
    %v1428 = vxor.u32 %v1396, 2147483648
    %v1429 = vxor.u32 %v1397, 2147483648
    %v1430 = vxor.u32 %v1398, 2147483648
    %v1431 = vxor.u32 %v1399, 2147483648
    %v1432 = vxor.u32 %v1400, 2147483648
    %v1433 = vxor.u32 %v1401, 2147483648
    %v1434 = vxor.u32 %v1402, 2147483648
    %v1435 = vxor.u32 %v1403, 2147483648
    %v1436 = vxor.u32 %v1404, 2147483648
    %v1437 = vmul.f32 %v1405, 1.442695
    %v1438 = vpow.pop %v1437
    %v1439 = vmul.f32 %v1406, 1.442695
    %v1440 = vpow.pop %v1439
    %v1441 = vmul.f32 %v1407, 1.442695
    %v1442 = vpow.pop %v1441
    %v1443 = vmul.f32 %v1408, 1.442695
    %v1444 = vpow.pop %v1443
    %v1445 = vmul.f32 %v1409, 1.442695
    %v1446 = vpow.pop %v1445
    %v1447 = vmul.f32 %v1410, 1.442695
    %v1448 = vpow.pop %v1447
    %v1449 = vmul.f32 %v1411, 1.442695
    %v1450 = vpow.pop %v1449
    %v1451 = vmul.f32 %v1412, 1.442695
    %v1452 = vpow.pop %v1451
    %v1453 = vmul.f32 %v1413, 1.442695
    %v1454 = vpow.pop %v1453
    %v1455 = vmul.f32 %v1414, 1.442695
    %v1456 = vpow.pop %v1455
    %v1457 = vmul.f32 %v1415, 1.442695
    %v1458 = vpow.pop %v1457
    %v1459 = vmul.f32 %v1416, 1.442695
    %v1460 = vpow.pop %v1459
    %v1461 = vmul.f32 %v1417, 1.442695
    %v1462 = vpow.pop %v1461
    %v1463 = vmul.f32 %v1418, 1.442695
    %v1464 = vpow.pop %v1463
    %v1465 = vmul.f32 %v1419, 1.442695
    %v1466 = vpow.pop %v1465
    %v1467 = vmul.f32 %v1420, 1.442695
    %v1468 = vpow.pop %v1467
    %v1469 = vmul.f32 %v1421, 1.442695
    %v1470 = vpow.pop %v1469
    %v1471 = vmul.f32 %v1422, 1.442695
    %v1472 = vpow.pop %v1471
    %v1473 = vmul.f32 %v1423, 1.442695
    %v1474 = vpow.pop %v1473
    %v1475 = vmul.f32 %v1424, 1.442695
    %v1476 = vpow.pop %v1475
    %v1477 = vmul.f32 %v1425, 1.442695
    %v1478 = vpow.pop %v1477
    %v1479 = vmul.f32 %v1426, 1.442695
    %v1480 = vpow.pop %v1479
    %v1481 = vmul.f32 %v1427, 1.442695
    %v1482 = vpow.pop %v1481
    %v1483 = vmul.f32 %v1428, 1.442695
    %v1484 = vpow.pop %v1483
    %v1485 = vmul.f32 %v1429, 1.442695
    %v1486 = vpow.pop %v1485
    %v1487 = vmul.f32 %v1430, 1.442695
    %v1488 = vpow.pop %v1487
    %v1489 = vmul.f32 %v1431, 1.442695
    %v1490 = vpow.pop %v1489
    %v1491 = vmul.f32 %v1432, 1.442695
    %v1492 = vpow.pop %v1491
    %v1493 = vmul.f32 %v1433, 1.442695
    %v1494 = vpow.pop %v1493
    %v1495 = vmul.f32 %v1434, 1.442695
    %v1496 = vpow.pop %v1495
    %v1497 = vmul.f32 %v1435, 1.442695
    %v1498 = vpow.pop %v1497
    %v1499 = vmul.f32 %v1436, 1.442695
    %v1500 = vpow.pop %v1499
    %v1501 = vadd.f32 %v1438, 1.0
    %v1502 = vadd.f32 %v1440, 1.0
    %v1503 = vadd.f32 %v1442, 1.0
    %v1504 = vadd.f32 %v1444, 1.0
    %v1505 = vadd.f32 %v1446, 1.0
    %v1506 = vadd.f32 %v1448, 1.0
    %v1507 = vadd.f32 %v1450, 1.0
    %v1508 = vadd.f32 %v1452, 1.0
    %v1509 = vadd.f32 %v1454, 1.0
    %v1510 = vadd.f32 %v1456, 1.0
    %v1511 = vadd.f32 %v1458, 1.0
    %v1512 = vadd.f32 %v1460, 1.0
    %v1513 = vadd.f32 %v1462, 1.0
    %v1514 = vadd.f32 %v1464, 1.0
    %v1515 = vadd.f32 %v1466, 1.0
    %v1516 = vadd.f32 %v1468, 1.0
    %v1517 = vadd.f32 %v1470, 1.0
    %v1518 = vadd.f32 %v1472, 1.0
    %v1519 = vadd.f32 %v1474, 1.0
    %v1520 = vadd.f32 %v1476, 1.0
    %v1521 = vadd.f32 %v1478, 1.0
    %v1522 = vadd.f32 %v1480, 1.0
    %v1523 = vadd.f32 %v1482, 1.0
    %v1524 = vadd.f32 %v1484, 1.0
    %v1525 = vadd.f32 %v1486, 1.0
    %v1526 = vadd.f32 %v1488, 1.0
    %v1527 = vadd.f32 %v1490, 1.0
    %v1528 = vadd.f32 %v1492, 1.0
    %v1529 = vadd.f32 %v1494, 1.0
    %v1530 = vadd.f32 %v1496, 1.0
    %v1531 = vadd.f32 %v1498, 1.0
    %v1532 = vadd.f32 %v1500, 1.0
    %v1533 = vrcp.pop %v1501
    %v1534 = vmul.f32 1.0, %v1533
    %v1535 = vrcp.pop %v1502
    %v1536 = vmul.f32 1.0, %v1535
    %v1537 = vrcp.pop %v1503
    %v1538 = vmul.f32 1.0, %v1537
    %v1539 = vrcp.pop %v1504
    %v1540 = vmul.f32 1.0, %v1539
    %v1541 = vrcp.pop %v1505
    %v1542 = vmul.f32 1.0, %v1541
    %v1543 = vrcp.pop %v1506
    %v1544 = vmul.f32 1.0, %v1543
    %v1545 = vrcp.pop %v1507
    %v1546 = vmul.f32 1.0, %v1545
    %v1547 = vrcp.pop %v1508
    %v1548 = vmul.f32 1.0, %v1547
    %v1549 = vrcp.pop %v1509
    %v1550 = vmul.f32 1.0, %v1549
    %v1551 = vrcp.pop %v1510
    %v1552 = vmul.f32 1.0, %v1551
    %v1553 = vrcp.pop %v1511
    %v1554 = vmul.f32 1.0, %v1553
    %v1555 = vrcp.pop %v1512
    %v1556 = vmul.f32 1.0, %v1555
    %v1557 = vrcp.pop %v1513
    %v1558 = vmul.f32 1.0, %v1557
    %v1559 = vrcp.pop %v1514
    %v1560 = vmul.f32 1.0, %v1559
    %v1561 = vrcp.pop %v1515
    %v1562 = vmul.f32 1.0, %v1561
    %v1563 = vrcp.pop %v1516
    %v1564 = vmul.f32 1.0, %v1563
    %v1565 = vrcp.pop %v1517
    %v1566 = vmul.f32 1.0, %v1565
    %v1567 = vrcp.pop %v1518
    %v1568 = vmul.f32 1.0, %v1567
    %v1569 = vrcp.pop %v1519
    %v1570 = vmul.f32 1.0, %v1569
    %v1571 = vrcp.pop %v1520
    %v1572 = vmul.f32 1.0, %v1571
    %v1573 = vrcp.pop %v1521
    %v1574 = vmul.f32 1.0, %v1573
    %v1575 = vrcp.pop %v1522
    %v1576 = vmul.f32 1.0, %v1575
    %v1577 = vrcp.pop %v1523
    %v1578 = vmul.f32 1.0, %v1577
    %v1579 = vrcp.pop %v1524
    %v1580 = vmul.f32 1.0, %v1579
    %v1581 = vrcp.pop %v1525
    %v1582 = vmul.f32 1.0, %v1581
    %v1583 = vrcp.pop %v1526
    %v1584 = vmul.f32 1.0, %v1583
    %v1585 = vrcp.pop %v1527
    %v1586 = vmul.f32 1.0, %v1585
    %v1587 = vrcp.pop %v1528
    %v1588 = vmul.f32 1.0, %v1587
    %v1589 = vrcp.pop %v1529
    %v1590 = vmul.f32 1.0, %v1589
    %v1591 = vrcp.pop %v1530
    %v1592 = vmul.f32 1.0, %v1591
    %v1593 = vrcp.pop %v1531
    %v1594 = vmul.f32 1.0, %v1593
    %v1595 = vrcp.pop %v1532
    %v1596 = vmul.f32 1.0, %v1595
    %vm1597 = vcmask 7168
    %1598 = vst.msk [vmem:[%s9] sm:$0xff] %vm1597, %v1534
    %1599 = vst.msk [vmem:[%s9 + $0x8] sm:$0xff] %vm1597, %v1536
    %1600 = vst.msk [vmem:[%s9 + $0x10] sm:$0xff] %vm1597, %v1538
    %1601 = vst.msk [vmem:[%s9 + $0x18] sm:$0xff] %vm1597, %v1540
    %1602 = vst.msk [vmem:[%s9 + $0x20] sm:$0xff] %vm1597, %v1542
    %1603 = vst.msk [vmem:[%s9 + $0x28] sm:$0xff] %vm1597, %v1544
    %1604 = vst.msk [vmem:[%s9 + $0x30] sm:$0xff] %vm1597, %v1546
    %1605 = vst.msk [vmem:[%s9 + $0x38] sm:$0xff] %vm1597, %v1548
    %1606 = vst.msk [vmem:[%s9 + $0x40] sm:$0xff] %vm1597, %v1550
    %1607 = vst.msk [vmem:[%s9 + $0x48] sm:$0xff] %vm1597, %v1552
    %1608 = vst.msk [vmem:[%s9 + $0x50] sm:$0xff] %vm1597, %v1554
    %1609 = vst.msk [vmem:[%s9 + $0x58] sm:$0xff] %vm1597, %v1556
    %1610 = vst.msk [vmem:[%s9 + $0x60] sm:$0xff] %vm1597, %v1558
    %1611 = vst.msk [vmem:[%s9 + $0x68] sm:$0xff] %vm1597, %v1560
    %1612 = vst.msk [vmem:[%s9 + $0x70] sm:$0xff] %vm1597, %v1562
    %1613 = vst.msk [vmem:[%s9 + $0x78] sm:$0xff] %vm1597, %v1564
    %1614 = vst.msk [vmem:[%s9 + $0x80] sm:$0xff] %vm1597, %v1566
    %1615 = vst.msk [vmem:[%s9 + $0x88] sm:$0xff] %vm1597, %v1568
    %1616 = vst.msk [vmem:[%s9 + $0x90] sm:$0xff] %vm1597, %v1570
    %1617 = vst.msk [vmem:[%s9 + $0x98] sm:$0xff] %vm1597, %v1572
    %1618 = vst.msk [vmem:[%s9 + $0xa0] sm:$0xff] %vm1597, %v1574
    %1619 = vst.msk [vmem:[%s9 + $0xa8] sm:$0xff] %vm1597, %v1576
    %1620 = vst.msk [vmem:[%s9 + $0xb0] sm:$0xff] %vm1597, %v1578
    %1621 = vst.msk [vmem:[%s9 + $0xb8] sm:$0xff] %vm1597, %v1580
    %1622 = vst.msk [vmem:[%s9 + $0xc0] sm:$0xff] %vm1597, %v1582
    %1623 = vst.msk [vmem:[%s9 + $0xc8] sm:$0xff] %vm1597, %v1584
    %1624 = vst.msk [vmem:[%s9 + $0xd0] sm:$0xff] %vm1597, %v1586
    %1625 = vst.msk [vmem:[%s9 + $0xd8] sm:$0xff] %vm1597, %v1588
    %1626 = vst.msk [vmem:[%s9 + $0xe0] sm:$0xff] %vm1597, %v1590
    %1627 = vst.msk [vmem:[%s9 + $0xe8] sm:$0xff] %vm1597, %v1592
    %1628 = vst.msk [vmem:[%s9 + $0xf0] sm:$0xff] %vm1597, %v1594
    %1629 = vst.msk [vmem:[%s9 + $0xf8] sm:$0xff] %vm1597, %v1596
    // Predicated region
    $region38: #{_lambda_.1} parent=1 // pred_check
      _
    $region39: #{_lambda_.1} parent=1 // pred_check_branch
      %1631 = sbr.rel (0) target = $region41
    $region40: #{_lambda_.1} parent=1 // pred_region
      _
    $region41: #{_lambda_.1} parent=1 // pred_fallthru
      _
    // Predicated region
    $region42: #{_lambda_.1} parent=1 // pred_check
      _
    $region43: #{_lambda_.1} parent=1 // pred_check_branch
      %1633 = sbr.rel (0) target = $region45
    $region44: #{_lambda_.1} parent=1 // pred_region
      %s1635 = ssub.s32 4096, 4096
      %1636 = vsyncadd [#allocation4], %s1635
      %s1637 = sshll.u32 [#allocation3], 4
      %s1638 = int_to_ptr.vmem [resolvable:$true] %s1637
      %1643 = dma.vmem_to_hbm [thread:$0]  %s1638, 4096, %s10, [#allocation4], 128, 128, 8
    $region45: #{_lambda_.1} parent=1 // pred_fallthru
      _
    // Predicated region
    $region46: #{_lambda_.1} parent=1 // pred_check
      _
    $region47: #{_lambda_.1} parent=1 // pred_check_branch
      %1645 = sbr.rel (0) target = $region49
    $region48: #{_lambda_.1} parent=1 // pred_region
      _
    $region49: #{_lambda_.1} parent=1 // pred_fallthru
      _
    // Predicated region
    $region50: #{_lambda_.1} parent=1 // pred_check
      _
    $region51: #{_lambda_.1} parent=1 // pred_check_branch
      %1647 = sbr.rel (0) target = $region53
    $region52: #{_lambda_.1} parent=1 // pred_region
      %1648 = dma.done [#allocation4], 4096
    $region53: #{_lambda_.1} parent=1 // pred_fallthru
      _
    %1649 = vsyncpa [#allocation4], 1

</llo_original>
